<compile_context>
chip_gen: v7x
topology: tpu7x:2x2x1
jax: 0.10.0
libtpu: 0.0.40
codegen_flags: <defaults>
</compile_context>

<pallas_src>
import jax
import jax.numpy as jnp
from jax.experimental import pallas as pl
from jax.experimental.pallas import tpu as pltpu


_LANES = 128
_ROW_ALIGN = 32                         # matches bf16 (16,128) / int8 (32,128) packing
_TARGET_BLOCK_BYTES = 4 * 1024 * 1024   # ~4 MiB per block buffer (~16 MiB pipelined in+out)
_VMEM_LIMIT_BYTES = 24 * 1024 * 1024    # above v5e's 16 MiB default scoped limit, safe on v6e/v7x
_MIN_PALLAS_BYTES = 64 * 1024           # below this, XLA-fused jnp beats kernel launch cost
_SOFTPLUS_THRESHOLD = 20.0              # torch F.softplus default threshold


def _mish_kernel(x_ref, o_ref):
    xf = x_ref[...].astype(jnp.float32)
    # tanh(softplus(x)) = tanh(log1p(t)) = t*(t+2) / (t*(t+2) + 2) with t = exp(x).
    # Exact divide (memory-bound kernel => accuracy is free).  The torch
    # softplus threshold (x > 20 -> softplus(x) = x, tanh(x) == 1 in f32,
    # so mish(x) = x) is preserved; the minimum() keeps the untaken exp
    # branch from overflowing.
    t = jnp.exp(jnp.minimum(xf, _SOFTPLUS_THRESHOLD))
    num = t * (t + 2.0)
    tanh_sp = num / (num + 2.0)
    y = jnp.where(xf > _SOFTPLUS_THRESHOLD, xf, xf * tanh_sp)
    o_ref[...] = y.astype(o_ref.dtype)


def _mish_jnp(x):
    # Plain-XLA path: exact torch-style mish.  Used for tiny inputs, the
    # <128-element ragged tail, and as the reference in the tests below.
    xf = x.astype(jnp.float32)
    sp = jnp.where(xf > _SOFTPLUS_THRESHOLD, xf,
                   jnp.log1p(jnp.exp(jnp.minimum(xf, _SOFTPLUS_THRESHOLD))))
    return (xf * jnp.tanh(sp)).astype(x.dtype)


def _round_up(v, m):
    return (v + m - 1) // m * m


def _mish_2d(x2d):
    rows, lanes = x2d.shape
    itemsize = jnp.dtype(x2d.dtype).itemsize

    # dtype-scaled block rows: ~4 MiB per buffer, 32-row aligned.
    max_block_rows = max(
        _ROW_ALIGN,
        (_TARGET_BLOCK_BYTES // (lanes * itemsize)) // _ROW_ALIGN * _ROW_ALIGN,
    )
    # Guarantee >= 2 (even) roughly equal grid steps so both v7x TensorCores
    # get balanced work; neutral on single-TC v5e/v6e.
    num_blocks = _round_up(max(2, pl.cdiv(rows, max_block_rows)), 2)
    block_rows = min(max_block_rows, _round_up(pl.cdiv(rows, num_blocks), _ROW_ALIGN))
    grid = (pl.cdiv(rows, block_rows),)

    nbytes = rows * lanes * itemsize
    return pl.pallas_call(
        _mish_kernel,
        out_shape=jax.ShapeDtypeStruct((rows, lanes), x2d.dtype),
        grid_spec=pltpu.PrefetchScalarGridSpec(
            num_scalar_prefetch=0,
            grid=grid,
            in_specs=[pl.BlockSpec((block_rows, lanes), lambda i: (i, 0))],
            out_specs=pl.BlockSpec((block_rows, lanes), lambda i: (i, 0)),
        ),
        compiler_params=pltpu.CompilerParams(
            dimension_semantics=("parallel",),
            vmem_limit_bytes=_VMEM_LIMIT_BYTES,
        ),
        cost_estimate=pl.CostEstimate(
            flops=7 * rows * lanes,
            transcendentals=rows * lanes,   # one exp per element
            bytes_accessed=2 * nbytes,
        ),
    )(x2d)


def mish(x):
    """Elementwise Mish (x * tanh(softplus(x))) via a Pallas TPU kernel."""
    orig_shape = x.shape
    n = x.size
    itemsize = jnp.dtype(x.dtype).itemsize

    if n * itemsize < _MIN_PALLAS_BYTES:
        # Tiny inputs: pallas_call launch/DMA setup dominates and blocks XLA
        # fusion with neighbouring ops; plain jnp is strictly faster.
        return _mish_jnp(x)

    flat = x.reshape(-1)
    rows = n // _LANES
    rem = n % _LANES

    if rem == 0:
        # Lane-aligned: reshape is a free bitcast, exactly 2 HBM passes.
        return _mish_2d(flat.reshape(rows, _LANES)).reshape(orig_shape)

    # Non-lane-aligned: push the bulk through the kernel and handle the
    # <128-element ragged tail with plain jnp — no whole-tensor pad/unpad.
    main = _mish_2d(flat[: rows * _LANES].reshape(rows, _LANES)).reshape(-1)
    tail = _mish_jnp(flat[rows * _LANES:])
    return jnp.concatenate([main, tail]).reshape(orig_shape)


if __name__ == "__main__":
    key = jax.random.PRNGKey(0)
    k1, k2, k3, k4 = jax.random.split(key, 4)

    # 1) Small NCHW tensor (typical conv-net Mish usage): tiny-input jnp path.
    x_small = jax.random.normal(k1, (2, 4, 16, 16), dtype=jnp.float32) * 3.0
    y_small = jax.block_until_ready(mish(x_small))
    assert y_small.shape == x_small.shape and y_small.dtype == x_small.dtype
    assert jnp.allclose(y_small, _mish_jnp(x_small), atol=1e-4, rtol=1e-4)

    # 2) Larger lane-aligned tensor: Pallas path, 2 parallel grid steps.
    x_big = jax.random.normal(k2, (8, 32, 32, 32), dtype=jnp.float32) * 3.0
    y_big = jax.block_until_ready(mish(x_big))
    assert y_big.shape == x_big.shape and y_big.dtype == x_big.dtype
    assert jnp.allclose(y_big, _mish_jnp(x_big), atol=1e-4, rtol=1e-4)

    # 3) Non-lane-aligned element count: kernel bulk + jnp ragged tail.
    x_odd = jax.random.normal(k3, (3, 5, 37, 41), dtype=jnp.float32) * 3.0
    y_odd = jax.block_until_ready(mish(x_odd))
    assert y_odd.shape == x_odd.shape and y_odd.dtype == x_odd.dtype
    assert jnp.allclose(y_odd, _mish_jnp(x_odd), atol=1e-4, rtol=1e-4)

    # 4) bf16 input: exercises dtype-scaled block sizing.
    x_bf16 = (jax.random.normal(k4, (4, 16, 32, 32), dtype=jnp.float32) * 3.0).astype(jnp.bfloat16)
    y_bf16 = jax.block_until_ready(mish(x_bf16))
    assert y_bf16.shape == x_bf16.shape and y_bf16.dtype == jnp.bfloat16
    assert jnp.allclose(y_bf16.astype(jnp.float32),
                        _mish_jnp(x_bf16).astype(jnp.float32),
                        atol=2e-2, rtol=2e-2)

    print("KERNEL_OK")
</pallas_src>

<mosaic_0001>
module attributes {stable_mosaic.version = 11 : i64} {
  func.func @_mish_kernel(%arg0: i32, %arg1: memref<1024x128xf32, #tpu.memory_space<vmem>>, %arg2: memref<1024x128xf32, #tpu.memory_space<vmem>>) attributes {dimension_semantics = [#tpu.dimension_semantics<parallel>], iteration_bounds = array<i64: 2>, scalar_prefetch = 0 : i64, scratch_operands = 0 : i64, tpu.core_type = #tpu.core_type<tc>, window_params = [{transform_indices = @transform_0, window_bounds = array<i64: 1024, 128>}, {transform_indices = @transform_1, window_bounds = array<i64: 1024, 128>}]} {
    %c0 = arith.constant 0 : index
    %c0_0 = arith.constant 0 : index
    %0 = vector.load %arg1[%c0, %c0_0] : memref<1024x128xf32, #tpu.memory_space<vmem>>, vector<1024x128xf32>
    %cst = arith.constant 2.000000e+01 : f32
    %1 = vector.broadcast %cst : f32 to vector<1024x128xf32>
    %2 = arith.minimumf %0, %1 : vector<1024x128xf32>
    %3 = math.exp %2 : vector<1024x128xf32>
    %cst_1 = arith.constant 2.000000e+00 : f32
    %4 = vector.broadcast %cst_1 : f32 to vector<1024x128xf32>
    %5 = arith.addf %3, %4 : vector<1024x128xf32>
    %6 = arith.mulf %3, %5 : vector<1024x128xf32>
    %cst_2 = arith.constant 2.000000e+00 : f32
    %7 = vector.broadcast %cst_2 : f32 to vector<1024x128xf32>
    %8 = arith.addf %6, %7 : vector<1024x128xf32>
    %9 = arith.divf %6, %8 : vector<1024x128xf32>
    %cst_3 = arith.constant 2.000000e+01 : f32
    %10 = vector.broadcast %cst_3 : f32 to vector<1024x128xf32>
    %11 = arith.cmpf ogt, %0, %10 : vector<1024x128xf32>
    %12 = arith.mulf %0, %9 : vector<1024x128xf32>
    %13 = arith.select %11, %0, %12 : vector<1024x128xi1>, vector<1024x128xf32>
    %c0_4 = arith.constant 0 : index
    %c0_5 = arith.constant 0 : index
    %14 = vector.load %arg2[%c0_4, %c0_5] : memref<1024x128xf32, #tpu.memory_space<vmem>>, vector<1024x128xf32>
    tpu.vector_store %arg2[%c0_4, %c0_5], %13 {strides = array<i32>} : memref<1024x128xf32, #tpu.memory_space<vmem>>, vector<1024x128xf32>,
    return
  }
  func.func @transform_0(%arg0: i32) -> (i32, i32) {
    %c0_i32 = arith.constant 0 : i32
    %c0_i32_0 = arith.constant 0 : i32
    return %arg0, %c0_i32 : i32, i32
  }
  func.func @transform_1(%arg0: i32) -> (i32, i32) {
    %c0_i32 = arith.constant 0 : i32
    %c0_i32_0 = arith.constant 0 : i32
    return %arg0, %c0_i32 : i32, i32
  }
}

</mosaic_0001>

<llo_original>
// kernel: tpu_custom_call.1
$region0: #{tpu_custom_call.1}
  #allocation0 [shape = 'u32[]', space=smem, size = 0x4, offset = 0x4, fixed_abs, tag = 'smem constant byte address 0x4 - core index']
  #allocation1 [shape = 'u32[144,128]{1,0:T(1,128)}', space=vmem, size = 0x12000, scoped, tag = 'internal scratch']
  %s0 = inlined_call_operand.hbm [shape: f32[2048,128], index: 0, kind: input, shape index: {}]
  %s1 = inlined_call_operand.hbm [shape: f32[2048,128], index: 1, kind: output, shape index: {}]
  %s2 = sld [smem:[#allocation0]]
  $region41: #{tpu_custom_call.1} parent=0
    _
  %s4 = ssub.s32 1, %s2
  %s5 = scalar_select 0, %s4, %s2
  $region1: #{tpu_custom_call.1} parent=0
    #allocation2 [shape = 'u8[1048576]{0}', space=vmem, size = 0x100000, scoped, tag = 'input window, operand 0']
    #allocation3 [shape = 's32[2]{0}', space=sflag, size = 0x8, scoped, tag = 'scoped memory for tpu_custom_call.1']
    #allocation4 [shape = 's32[2]{0}', space=sflag, size = 0x8, scoped, tag = 'scoped memory for tpu_custom_call.1']
    #allocation5 [shape = 'u8[1048576]{0}', space=vmem, size = 0x100000, scoped, tag = 'output window, operand 0']
    %6 = vsyncpa [#allocation3], 0
    %s7 = scalar_lea.sflag [#allocation3], 1
    %8 = vsyncpa %s7, 0
    %9 = vsyncpa [#allocation4], 0
    %s10 = scalar_lea.sflag [#allocation4], 1
    %11 = vsyncpa %s10, 0
    loop: start=0, step=1, limit=4
    $region2: #{tpu_custom_call.1} parent=1 // loop_pre_header
      _
    $region3: #{tpu_custom_call.1} parent=1 // loop_header
      %s13 = sphi 0, %s17
      %p14 = scmp.ge.s32.totalorder %s13, 4
      %s23 = sphi 0, %s25
      %s26 = sphi 0, %s23
      %s27 = sphi 0, %s26
      %s43 = sphi 0, %s27
      %s49 = sphi 0, %s51
      %s52 = sphi 0, %s49
      %s53 = sphi 0, %s52
      %s69 = sphi 0, %s53
    $region4: #{tpu_custom_call.1} parent=1 // loop_header_branch
      %16 = sbr.rel (%p14) target = $region8
    $region5: #{tpu_custom_call.1} parent=1 // loop_body
      %s18 = ssub.s32 %s13, 1
      %s19 = ssub.s32 %s13, 2
      %s20 = sadd.s32 %s13, 1
      %s21 = ssub.s32 %s13, %s20
      %p22 = scmp.eq.s32.totalorder %s21, 0
      %s24 = sadd.s32 %s23, 1
      %s25 = scalar_select %p22, %s23, %s24
      %p28 = pneg %p22
      %p29 = scmp.eq.s32.totalorder %s13, 1
      %p30 = por %p28, %p29
      %p31 = scmp.ne.s32.totalorder %s23, %s26
      %p32 = scmp.eq.s32.totalorder %s13, 0
      %p33 = por %p31, %p32
      %p34 = scmp.ne.s32.totalorder %s23, %s26
      %p35 = scmp.eq.s32.totalorder %s18, 1
      %p36 = por %p34, %p35
      %p37 = scmp.ne.s32.totalorder %s26, %s27
      %p38 = scmp.eq.s32.totalorder %s18, 0
      %p39 = por %p37, %p38
      %p40 = scmp.ne.s32.totalorder %s26, %s27
      %p41 = scmp.eq.s32.totalorder %s19, 1
      %p42 = por %p40, %p41
      %p44 = scmp.ne.s32.totalorder %s27, %s43
      %p45 = scmp.eq.s32.totalorder %s19, 0
      %p46 = por %p44, %p45
      %s47 = ssub.s32 %s13, %s20
      %p48 = scmp.eq.s32.totalorder %s47, 0
      %s50 = sadd.s32 %s49, 1
      %s51 = scalar_select %p48, %s49, %s50
      %p54 = pneg %p48
      %p55 = scmp.eq.s32.totalorder %s13, 1
      %p56 = por %p54, %p55
      %p57 = scmp.ne.s32.totalorder %s49, %s52
      %p58 = scmp.eq.s32.totalorder %s13, 0
      %p59 = por %p57, %p58
      %p60 = scmp.ne.s32.totalorder %s49, %s52
      %p61 = scmp.eq.s32.totalorder %s18, 1
      %p62 = por %p60, %p61
      %p63 = scmp.ne.s32.totalorder %s52, %s53
      %p64 = scmp.eq.s32.totalorder %s18, 0
      %p65 = por %p63, %p64
      %p66 = scmp.ne.s32.totalorder %s52, %s53
      %p67 = scmp.eq.s32.totalorder %s19, 1
      %p68 = por %p66, %p67
      %p70 = scmp.ne.s32.totalorder %s53, %s69
      %p71 = scmp.eq.s32.totalorder %s19, 0
      %p72 = por %p70, %p71
      %p73 = scmp.le.s32.totalorder 1, %s13
      %p74 = scmp.lt.s32.totalorder %s13, 3
      %p75 = pnand %p73, %p74
      %p76 = pneg %p75
      // Predicated region
      $region9: #{tpu_custom_call.1} parent=5 // pred_check
        _
      $region10: #{tpu_custom_call.1} parent=5 // pred_check_branch
        %78 = sbr.rel (%p75) target = $region12
      $region11: #{tpu_custom_call.1} parent=5 // pred_region
        %s79 = ssub.s32 %s13, 1
      $region12: #{tpu_custom_call.1} parent=5 // pred_fallthru
        _
      %p80 = scmp.lt.s32.totalorder %s13, 2
      // Predicated region
      $region13: #{tpu_custom_call.1} parent=5 // pred_check
        %p81 = pneg %p80
      $region14: #{tpu_custom_call.1} parent=5 // pred_check_branch
        %83 = sbr.rel (%p81) target = $region16
      $region15: #{tpu_custom_call.1} parent=5 // pred_region
        // Predicated region
        $region17: #{tpu_custom_call.1} parent=15 // pred_check
          %p84 = pneg %p33
        $region18: #{tpu_custom_call.1} parent=15 // pred_check_branch
          %86 = sbr.rel (%p84) target = $region20
        $region19: #{tpu_custom_call.1} parent=15 // pred_region
          %s87 = sand.u32 %s23, 1
          %s88 = scalar_lea.sflag [#allocation3], %s87
          %s89 = sand.u32 %s23, 1
          %s90 = smul.addr %s89, 1024
          %s91 = scalar_lea.vmem [#allocation2], %s90
          %s92 = smul.u32 128, %s13
          %s94 = ssub.s32 16384, 16384
          %95 = vsyncadd %s88, %s94
          %s96 = smul.addr %s92, 128
          %s97 = scalar_lea.hbm %s0, %s96
          %s98 = sshll.u32 %s91, 4
          %s99 = int_to_ptr.vmem [resolvable:$true] %s98
          %104 = dma.hbm_to_vmem [thread:$0]  %s97, 16384, %s99, %s88, 128, 128, 8
        $region20: #{tpu_custom_call.1} parent=15 // pred_fallthru
          _
      $region16: #{tpu_custom_call.1} parent=5 // pred_fallthru
        _
      %p105 = scmp.le.s32.totalorder 1, %s13
      %p106 = scmp.lt.s32.totalorder %s13, 3
      %p107 = pnand %p105, %p106
      %p108 = pneg %p107
      // Predicated region
      $region21: #{tpu_custom_call.1} parent=5 // pred_check
        _
      $region22: #{tpu_custom_call.1} parent=5 // pred_check_branch
        %110 = sbr.rel (%p107) target = $region24
      $region23: #{tpu_custom_call.1} parent=5 // pred_region
        %s111 = ssub.s32 %s13, 1
        %s112 = sand.u32 %s26, 1
        %s113 = scalar_lea.sflag [#allocation3], %s112
        %s114 = sand.u32 %s26, 1
        %s115 = smul.addr %s114, 1024
        %s116 = scalar_lea.vmem [#allocation2], %s115
        // Predicated region
        $region25: #{tpu_custom_call.1} parent=23 // pred_check
          %p117 = pneg %p39
        $region26: #{tpu_custom_call.1} parent=23 // pred_check_branch
          %119 = sbr.rel (%p117) target = $region28
        $region27: #{tpu_custom_call.1} parent=23 // pred_region
          %120 = dma.done %s113, 16384
        $region28: #{tpu_custom_call.1} parent=23 // pred_fallthru
          _
        %s121 = sand.u32 %s26, 1
        %s122 = scalar_lea.sflag [#allocation3], %s121
        %s123 = sand.u32 %s26, 1
        %s124 = smul.addr %s123, 1024
        %s125 = scalar_lea.vmem [#allocation2], %s124
        %p126 = pneg %p39
        %p127 = pneg %p36
        %p128 = pneg %p65
        %p129 = pneg %p62
        %s130 = sand.u32 %s52, 1
        %s131 = scalar_lea.sflag [#allocation4], %s130
        %s132 = sand.u32 %s52, 1
        %s133 = smul.addr %s132, 1024
        %s134 = scalar_lea.vmem [#allocation5], %s133
        %s135 = smul.u32 128, %s18
        %s136 = smul.u32 128, %s18
        %v137 = vld [vmem:[%s116] sm:$0xff]
        %v138 = vld [vmem:[%s116 + $0x8] sm:$0xff]
        %v139 = vld [vmem:[%s116 + $0x10] sm:$0xff]
        %v140 = vld [vmem:[%s116 + $0x18] sm:$0xff]
        %v141 = vld [vmem:[%s116 + $0x20] sm:$0xff]
        %v142 = vld [vmem:[%s116 + $0x28] sm:$0xff]
        %v143 = vld [vmem:[%s116 + $0x30] sm:$0xff]
        %v144 = vld [vmem:[%s116 + $0x38] sm:$0xff]
        %v145 = vld [vmem:[%s116 + $0x40] sm:$0xff]
        %v146 = vld [vmem:[%s116 + $0x48] sm:$0xff]
        %v147 = vld [vmem:[%s116 + $0x50] sm:$0xff]
        %v148 = vld [vmem:[%s116 + $0x58] sm:$0xff]
        %v149 = vld [vmem:[%s116 + $0x60] sm:$0xff]
        %v150 = vld [vmem:[%s116 + $0x68] sm:$0xff]
        %v151 = vld [vmem:[%s116 + $0x70] sm:$0xff]
        %v152 = vld [vmem:[%s116 + $0x78] sm:$0xff]
        %v153 = vld [vmem:[%s116 + $0x80] sm:$0xff]
        %v154 = vld [vmem:[%s116 + $0x88] sm:$0xff]
        %v155 = vld [vmem:[%s116 + $0x90] sm:$0xff]
        %v156 = vld [vmem:[%s116 + $0x98] sm:$0xff]
        %v157 = vld [vmem:[%s116 + $0xa0] sm:$0xff]
        %v158 = vld [vmem:[%s116 + $0xa8] sm:$0xff]
        %v159 = vld [vmem:[%s116 + $0xb0] sm:$0xff]
        %v160 = vld [vmem:[%s116 + $0xb8] sm:$0xff]
        %v161 = vld [vmem:[%s116 + $0xc0] sm:$0xff]
        %v162 = vld [vmem:[%s116 + $0xc8] sm:$0xff]
        %v163 = vld [vmem:[%s116 + $0xd0] sm:$0xff]
        %v164 = vld [vmem:[%s116 + $0xd8] sm:$0xff]
        %v165 = vld [vmem:[%s116 + $0xe0] sm:$0xff]
        %v166 = vld [vmem:[%s116 + $0xe8] sm:$0xff]
        %v167 = vld [vmem:[%s116 + $0xf0] sm:$0xff]
        %v168 = vld [vmem:[%s116 + $0xf8] sm:$0xff]
        %v169 = vld [vmem:[%s116 + $0x100] sm:$0xff]
        %v170 = vld [vmem:[%s116 + $0x108] sm:$0xff]
        %v171 = vld [vmem:[%s116 + $0x110] sm:$0xff]
        %v172 = vld [vmem:[%s116 + $0x118] sm:$0xff]
        %v173 = vld [vmem:[%s116 + $0x120] sm:$0xff]
        %v174 = vld [vmem:[%s116 + $0x128] sm:$0xff]
        %v175 = vld [vmem:[%s116 + $0x130] sm:$0xff]
        %v176 = vld [vmem:[%s116 + $0x138] sm:$0xff]
        %v177 = vld [vmem:[%s116 + $0x140] sm:$0xff]
        %v178 = vld [vmem:[%s116 + $0x148] sm:$0xff]
        %v179 = vld [vmem:[%s116 + $0x150] sm:$0xff]
        %v180 = vld [vmem:[%s116 + $0x158] sm:$0xff]
        %v181 = vld [vmem:[%s116 + $0x160] sm:$0xff]
        %v182 = vld [vmem:[%s116 + $0x168] sm:$0xff]
        %v183 = vld [vmem:[%s116 + $0x170] sm:$0xff]
        %v184 = vld [vmem:[%s116 + $0x178] sm:$0xff]
        %v185 = vld [vmem:[%s116 + $0x180] sm:$0xff]
        %v186 = vld [vmem:[%s116 + $0x188] sm:$0xff]
        %v187 = vld [vmem:[%s116 + $0x190] sm:$0xff]
        %v188 = vld [vmem:[%s116 + $0x198] sm:$0xff]
        %v189 = vld [vmem:[%s116 + $0x1a0] sm:$0xff]
        %v190 = vld [vmem:[%s116 + $0x1a8] sm:$0xff]
        %v191 = vld [vmem:[%s116 + $0x1b0] sm:$0xff]
        %v192 = vld [vmem:[%s116 + $0x1b8] sm:$0xff]
        %v193 = vld [vmem:[%s116 + $0x1c0] sm:$0xff]
        %v194 = vld [vmem:[%s116 + $0x1c8] sm:$0xff]
        %v195 = vld [vmem:[%s116 + $0x1d0] sm:$0xff]
        %v196 = vld [vmem:[%s116 + $0x1d8] sm:$0xff]
        %v197 = vld [vmem:[%s116 + $0x1e0] sm:$0xff]
        %v198 = vld [vmem:[%s116 + $0x1e8] sm:$0xff]
        %v199 = vld [vmem:[%s116 + $0x1f0] sm:$0xff]
        %v200 = vld [vmem:[%s116 + $0x1f8] sm:$0xff]
        %v201 = vld [vmem:[%s116 + $0x200] sm:$0xff]
        %v202 = vld [vmem:[%s116 + $0x208] sm:$0xff]
        %v203 = vld [vmem:[%s116 + $0x210] sm:$0xff]
        %v204 = vld [vmem:[%s116 + $0x218] sm:$0xff]
        %v205 = vld [vmem:[%s116 + $0x220] sm:$0xff]
        %v206 = vld [vmem:[%s116 + $0x228] sm:$0xff]
        %v207 = vld [vmem:[%s116 + $0x230] sm:$0xff]
        %v208 = vld [vmem:[%s116 + $0x238] sm:$0xff]
        %v209 = vld [vmem:[%s116 + $0x240] sm:$0xff]
        %v210 = vld [vmem:[%s116 + $0x248] sm:$0xff]
        %v211 = vld [vmem:[%s116 + $0x250] sm:$0xff]
        %v212 = vld [vmem:[%s116 + $0x258] sm:$0xff]
        %v213 = vld [vmem:[%s116 + $0x260] sm:$0xff]
        %v214 = vld [vmem:[%s116 + $0x268] sm:$0xff]
        %v215 = vld [vmem:[%s116 + $0x270] sm:$0xff]
        %v216 = vld [vmem:[%s116 + $0x278] sm:$0xff]
        %v217 = vld [vmem:[%s116 + $0x280] sm:$0xff]
        %v218 = vld [vmem:[%s116 + $0x288] sm:$0xff]
        %v219 = vld [vmem:[%s116 + $0x290] sm:$0xff]
        %v220 = vld [vmem:[%s116 + $0x298] sm:$0xff]
        %v221 = vld [vmem:[%s116 + $0x2a0] sm:$0xff]
        %v222 = vld [vmem:[%s116 + $0x2a8] sm:$0xff]
        %v223 = vld [vmem:[%s116 + $0x2b0] sm:$0xff]
        %v224 = vld [vmem:[%s116 + $0x2b8] sm:$0xff]
        %v225 = vld [vmem:[%s116 + $0x2c0] sm:$0xff]
        %v226 = vld [vmem:[%s116 + $0x2c8] sm:$0xff]
        %v227 = vld [vmem:[%s116 + $0x2d0] sm:$0xff]
        %v228 = vld [vmem:[%s116 + $0x2d8] sm:$0xff]
        %v229 = vld [vmem:[%s116 + $0x2e0] sm:$0xff]
        %v230 = vld [vmem:[%s116 + $0x2e8] sm:$0xff]
        %v231 = vld [vmem:[%s116 + $0x2f0] sm:$0xff]
        %v232 = vld [vmem:[%s116 + $0x2f8] sm:$0xff]
        %v233 = vld [vmem:[%s116 + $0x300] sm:$0xff]
        %v234 = vld [vmem:[%s116 + $0x308] sm:$0xff]
        %v235 = vld [vmem:[%s116 + $0x310] sm:$0xff]
        %v236 = vld [vmem:[%s116 + $0x318] sm:$0xff]
        %v237 = vld [vmem:[%s116 + $0x320] sm:$0xff]
        %v238 = vld [vmem:[%s116 + $0x328] sm:$0xff]
        %v239 = vld [vmem:[%s116 + $0x330] sm:$0xff]
        %v240 = vld [vmem:[%s116 + $0x338] sm:$0xff]
        %v241 = vld [vmem:[%s116 + $0x340] sm:$0xff]
        %v242 = vld [vmem:[%s116 + $0x348] sm:$0xff]
        %v243 = vld [vmem:[%s116 + $0x350] sm:$0xff]
        %v244 = vld [vmem:[%s116 + $0x358] sm:$0xff]
        %v245 = vld [vmem:[%s116 + $0x360] sm:$0xff]
        %v246 = vld [vmem:[%s116 + $0x368] sm:$0xff]
        %v247 = vld [vmem:[%s116 + $0x370] sm:$0xff]
        %v248 = vld [vmem:[%s116 + $0x378] sm:$0xff]
        %v249 = vld [vmem:[%s116 + $0x380] sm:$0xff]
        %v250 = vld [vmem:[%s116 + $0x388] sm:$0xff]
        %v251 = vld [vmem:[%s116 + $0x390] sm:$0xff]
        %v252 = vld [vmem:[%s116 + $0x398] sm:$0xff]
        %v253 = vld [vmem:[%s116 + $0x3a0] sm:$0xff]
        %v254 = vld [vmem:[%s116 + $0x3a8] sm:$0xff]
        %v255 = vld [vmem:[%s116 + $0x3b0] sm:$0xff]
        %v256 = vld [vmem:[%s116 + $0x3b8] sm:$0xff]
        %v257 = vld [vmem:[%s116 + $0x3c0] sm:$0xff]
        %v258 = vld [vmem:[%s116 + $0x3c8] sm:$0xff]
        %v259 = vld [vmem:[%s116 + $0x3d0] sm:$0xff]
        %v260 = vld [vmem:[%s116 + $0x3d8] sm:$0xff]
        %v261 = vld [vmem:[%s116 + $0x3e0] sm:$0xff]
        %v262 = vld [vmem:[%s116 + $0x3e8] sm:$0xff]
        %v263 = vld [vmem:[%s116 + $0x3f0] sm:$0xff]
        %v264 = vld [vmem:[%s116 + $0x3f8] sm:$0xff]
        %v265 = vmin.f32 %v137, 20.0
        %v266 = vmin.f32 %v138, 20.0
        %v267 = vmin.f32 %v139, 20.0
        %v268 = vmin.f32 %v140, 20.0
        %v269 = vmin.f32 %v141, 20.0
        %v270 = vmin.f32 %v142, 20.0
        %v271 = vmin.f32 %v143, 20.0
        %v272 = vmin.f32 %v144, 20.0
        %v273 = vmin.f32 %v145, 20.0
        %v274 = vmin.f32 %v146, 20.0
        %v275 = vmin.f32 %v147, 20.0
        %v276 = vmin.f32 %v148, 20.0
        %v277 = vmin.f32 %v149, 20.0
        %v278 = vmin.f32 %v150, 20.0
        %v279 = vmin.f32 %v151, 20.0
        %v280 = vmin.f32 %v152, 20.0
        %v281 = vmin.f32 %v153, 20.0
        %v282 = vmin.f32 %v154, 20.0
        %v283 = vmin.f32 %v155, 20.0
        %v284 = vmin.f32 %v156, 20.0
        %v285 = vmin.f32 %v157, 20.0
        %v286 = vmin.f32 %v158, 20.0
        %v287 = vmin.f32 %v159, 20.0
        %v288 = vmin.f32 %v160, 20.0
        %v289 = vmin.f32 %v161, 20.0
        %v290 = vmin.f32 %v162, 20.0
        %v291 = vmin.f32 %v163, 20.0
        %v292 = vmin.f32 %v164, 20.0
        %v293 = vmin.f32 %v165, 20.0
        %v294 = vmin.f32 %v166, 20.0
        %v295 = vmin.f32 %v167, 20.0
        %v296 = vmin.f32 %v168, 20.0
        %v297 = vmin.f32 %v169, 20.0
        %v298 = vmin.f32 %v170, 20.0
        %v299 = vmin.f32 %v171, 20.0
        %v300 = vmin.f32 %v172, 20.0
        %v301 = vmin.f32 %v173, 20.0
        %v302 = vmin.f32 %v174, 20.0
        %v303 = vmin.f32 %v175, 20.0
        %v304 = vmin.f32 %v176, 20.0
        %v305 = vmin.f32 %v177, 20.0
        %v306 = vmin.f32 %v178, 20.0
        %v307 = vmin.f32 %v179, 20.0
        %v308 = vmin.f32 %v180, 20.0
        %v309 = vmin.f32 %v181, 20.0
        %v310 = vmin.f32 %v182, 20.0
        %v311 = vmin.f32 %v183, 20.0
        %v312 = vmin.f32 %v184, 20.0
        %v313 = vmin.f32 %v185, 20.0
        %v314 = vmin.f32 %v186, 20.0
        %v315 = vmin.f32 %v187, 20.0
        %v316 = vmin.f32 %v188, 20.0
        %v317 = vmin.f32 %v189, 20.0
        %v318 = vmin.f32 %v190, 20.0
        %v319 = vmin.f32 %v191, 20.0
        %v320 = vmin.f32 %v192, 20.0
        %v321 = vmin.f32 %v193, 20.0
        %v322 = vmin.f32 %v194, 20.0
        %v323 = vmin.f32 %v195, 20.0
        %v324 = vmin.f32 %v196, 20.0
        %v325 = vmin.f32 %v197, 20.0
        %v326 = vmin.f32 %v198, 20.0
        %v327 = vmin.f32 %v199, 20.0
        %v328 = vmin.f32 %v200, 20.0
        %v329 = vmin.f32 %v201, 20.0
        %v330 = vmin.f32 %v202, 20.0
        %v331 = vmin.f32 %v203, 20.0
        %v332 = vmin.f32 %v204, 20.0
        %v333 = vmin.f32 %v205, 20.0
        %v334 = vmin.f32 %v206, 20.0
        %v335 = vmin.f32 %v207, 20.0
        %v336 = vmin.f32 %v208, 20.0
        %v337 = vmin.f32 %v209, 20.0
        %v338 = vmin.f32 %v210, 20.0
        %v339 = vmin.f32 %v211, 20.0
        %v340 = vmin.f32 %v212, 20.0
        %v341 = vmin.f32 %v213, 20.0
        %v342 = vmin.f32 %v214, 20.0
        %v343 = vmin.f32 %v215, 20.0
        %v344 = vmin.f32 %v216, 20.0
        %v345 = vmin.f32 %v217, 20.0
        %v346 = vmin.f32 %v218, 20.0
        %v347 = vmin.f32 %v219, 20.0
        %v348 = vmin.f32 %v220, 20.0
        %v349 = vmin.f32 %v221, 20.0
        %v350 = vmin.f32 %v222, 20.0
        %v351 = vmin.f32 %v223, 20.0
        %v352 = vmin.f32 %v224, 20.0
        %v353 = vmin.f32 %v225, 20.0
        %v354 = vmin.f32 %v226, 20.0
        %v355 = vmin.f32 %v227, 20.0
        %v356 = vmin.f32 %v228, 20.0
        %v357 = vmin.f32 %v229, 20.0
        %v358 = vmin.f32 %v230, 20.0
        %v359 = vmin.f32 %v231, 20.0
        %v360 = vmin.f32 %v232, 20.0
        %v361 = vmin.f32 %v233, 20.0
        %v362 = vmin.f32 %v234, 20.0
        %v363 = vmin.f32 %v235, 20.0
        %v364 = vmin.f32 %v236, 20.0
        %v365 = vmin.f32 %v237, 20.0
        %v366 = vmin.f32 %v238, 20.0
        %v367 = vmin.f32 %v239, 20.0
        %v368 = vmin.f32 %v240, 20.0
        %v369 = vmin.f32 %v241, 20.0
        %v370 = vmin.f32 %v242, 20.0
        %v371 = vmin.f32 %v243, 20.0
        %v372 = vmin.f32 %v244, 20.0
        %v373 = vmin.f32 %v245, 20.0
        %v374 = vmin.f32 %v246, 20.0
        %v375 = vmin.f32 %v247, 20.0
        %v376 = vmin.f32 %v248, 20.0
        %v377 = vmin.f32 %v249, 20.0
        %v378 = vmin.f32 %v250, 20.0
        %v379 = vmin.f32 %v251, 20.0
        %v380 = vmin.f32 %v252, 20.0
        %v381 = vmin.f32 %v253, 20.0
        %v382 = vmin.f32 %v254, 20.0
        %v383 = vmin.f32 %v255, 20.0
        %v384 = vmin.f32 %v256, 20.0
        %v385 = vmin.f32 %v257, 20.0
        %v386 = vmin.f32 %v258, 20.0
        %v387 = vmin.f32 %v259, 20.0
        %v388 = vmin.f32 %v260, 20.0
        %v389 = vmin.f32 %v261, 20.0
        %v390 = vmin.f32 %v262, 20.0
        %v391 = vmin.f32 %v263, 20.0
        %v392 = vmin.f32 %v264, 20.0
        %v393 = vmul.f32 %v265, 1.442695
        %v394 = vpow.pop %v393
        %v395 = vmul.f32 %v266, 1.442695
        %v396 = vpow.pop %v395
        %v397 = vmul.f32 %v267, 1.442695
        %v398 = vpow.pop %v397
        %v399 = vmul.f32 %v268, 1.442695
        %v400 = vpow.pop %v399
        %v401 = vmul.f32 %v269, 1.442695
        %v402 = vpow.pop %v401
        %v403 = vmul.f32 %v270, 1.442695
        %v404 = vpow.pop %v403
        %v405 = vmul.f32 %v271, 1.442695
        %v406 = vpow.pop %v405
        %v407 = vmul.f32 %v272, 1.442695
        %v408 = vpow.pop %v407
        %v409 = vmul.f32 %v273, 1.442695
        %v410 = vpow.pop %v409
        %v411 = vmul.f32 %v274, 1.442695
        %v412 = vpow.pop %v411
        %v413 = vmul.f32 %v275, 1.442695
        %v414 = vpow.pop %v413
        %v415 = vmul.f32 %v276, 1.442695
        %v416 = vpow.pop %v415
        %v417 = vmul.f32 %v277, 1.442695
        %v418 = vpow.pop %v417
        %v419 = vmul.f32 %v278, 1.442695
        %v420 = vpow.pop %v419
        %v421 = vmul.f32 %v279, 1.442695
        %v422 = vpow.pop %v421
        %v423 = vmul.f32 %v280, 1.442695
        %v424 = vpow.pop %v423
        %v425 = vmul.f32 %v281, 1.442695
        %v426 = vpow.pop %v425
        %v427 = vmul.f32 %v282, 1.442695
        %v428 = vpow.pop %v427
        %v429 = vmul.f32 %v283, 1.442695
        %v430 = vpow.pop %v429
        %v431 = vmul.f32 %v284, 1.442695
        %v432 = vpow.pop %v431
        %v433 = vmul.f32 %v285, 1.442695
        %v434 = vpow.pop %v433
        %v435 = vmul.f32 %v286, 1.442695
        %v436 = vpow.pop %v435
        %v437 = vmul.f32 %v287, 1.442695
        %v438 = vpow.pop %v437
        %v439 = vmul.f32 %v288, 1.442695
        %v440 = vpow.pop %v439
        %v441 = vmul.f32 %v289, 1.442695
        %v442 = vpow.pop %v441
        %v443 = vmul.f32 %v290, 1.442695
        %v444 = vpow.pop %v443
        %v445 = vmul.f32 %v291, 1.442695
        %v446 = vpow.pop %v445
        %v447 = vmul.f32 %v292, 1.442695
        %v448 = vpow.pop %v447
        %v449 = vmul.f32 %v293, 1.442695
        %v450 = vpow.pop %v449
        %v451 = vmul.f32 %v294, 1.442695
        %v452 = vpow.pop %v451
        %v453 = vmul.f32 %v295, 1.442695
        %v454 = vpow.pop %v453
        %v455 = vmul.f32 %v296, 1.442695
        %v456 = vpow.pop %v455
        %v457 = vmul.f32 %v297, 1.442695
        %v458 = vpow.pop %v457
        %v459 = vmul.f32 %v298, 1.442695
        %v460 = vpow.pop %v459
        %v461 = vmul.f32 %v299, 1.442695
        %v462 = vpow.pop %v461
        %v463 = vmul.f32 %v300, 1.442695
        %v464 = vpow.pop %v463
        %v465 = vmul.f32 %v301, 1.442695
        %v466 = vpow.pop %v465
        %v467 = vmul.f32 %v302, 1.442695
        %v468 = vpow.pop %v467
        %v469 = vmul.f32 %v303, 1.442695
        %v470 = vpow.pop %v469
        %v471 = vmul.f32 %v304, 1.442695
        %v472 = vpow.pop %v471
        %v473 = vmul.f32 %v305, 1.442695
        %v474 = vpow.pop %v473
        %v475 = vmul.f32 %v306, 1.442695
        %v476 = vpow.pop %v475
        %v477 = vmul.f32 %v307, 1.442695
        %v478 = vpow.pop %v477
        %v479 = vmul.f32 %v308, 1.442695
        %v480 = vpow.pop %v479
        %v481 = vmul.f32 %v309, 1.442695
        %v482 = vpow.pop %v481
        %v483 = vmul.f32 %v310, 1.442695
        %v484 = vpow.pop %v483
        %v485 = vmul.f32 %v311, 1.442695
        %v486 = vpow.pop %v485
        %v487 = vmul.f32 %v312, 1.442695
        %v488 = vpow.pop %v487
        %v489 = vmul.f32 %v313, 1.442695
        %v490 = vpow.pop %v489
        %v491 = vmul.f32 %v314, 1.442695
        %v492 = vpow.pop %v491
        %v493 = vmul.f32 %v315, 1.442695
        %v494 = vpow.pop %v493
        %v495 = vmul.f32 %v316, 1.442695
        %v496 = vpow.pop %v495
        %v497 = vmul.f32 %v317, 1.442695
        %v498 = vpow.pop %v497
        %v499 = vmul.f32 %v318, 1.442695
        %v500 = vpow.pop %v499
        %v501 = vmul.f32 %v319, 1.442695
        %v502 = vpow.pop %v501
        %v503 = vmul.f32 %v320, 1.442695
        %v504 = vpow.pop %v503
        %v505 = vmul.f32 %v321, 1.442695
        %v506 = vpow.pop %v505
        %v507 = vmul.f32 %v322, 1.442695
        %v508 = vpow.pop %v507
        %v509 = vmul.f32 %v323, 1.442695
        %v510 = vpow.pop %v509
        %v511 = vmul.f32 %v324, 1.442695
        %v512 = vpow.pop %v511
        %v513 = vmul.f32 %v325, 1.442695
        %v514 = vpow.pop %v513
        %v515 = vmul.f32 %v326, 1.442695
        %v516 = vpow.pop %v515
        %v517 = vmul.f32 %v327, 1.442695
        %v518 = vpow.pop %v517
        %v519 = vmul.f32 %v328, 1.442695
        %v520 = vpow.pop %v519
        %v521 = vmul.f32 %v329, 1.442695
        %v522 = vpow.pop %v521
        %v523 = vmul.f32 %v330, 1.442695
        %v524 = vpow.pop %v523
        %v525 = vmul.f32 %v331, 1.442695
        %v526 = vpow.pop %v525
        %v527 = vmul.f32 %v332, 1.442695
        %v528 = vpow.pop %v527
        %v529 = vmul.f32 %v333, 1.442695
        %v530 = vpow.pop %v529
        %v531 = vmul.f32 %v334, 1.442695
        %v532 = vpow.pop %v531
        %v533 = vmul.f32 %v335, 1.442695
        %v534 = vpow.pop %v533
        %v535 = vmul.f32 %v336, 1.442695
        %v536 = vpow.pop %v535
        %v537 = vmul.f32 %v337, 1.442695
        %v538 = vpow.pop %v537
        %v539 = vmul.f32 %v338, 1.442695
        %v540 = vpow.pop %v539
        %v541 = vmul.f32 %v339, 1.442695
        %v542 = vpow.pop %v541
        %v543 = vmul.f32 %v340, 1.442695
        %v544 = vpow.pop %v543
        %v545 = vmul.f32 %v341, 1.442695
        %v546 = vpow.pop %v545
        %v547 = vmul.f32 %v342, 1.442695
        %v548 = vpow.pop %v547
        %v549 = vmul.f32 %v343, 1.442695
        %v550 = vpow.pop %v549
        %v551 = vmul.f32 %v344, 1.442695
        %v552 = vpow.pop %v551
        %v553 = vmul.f32 %v345, 1.442695
        %v554 = vpow.pop %v553
        %v555 = vmul.f32 %v346, 1.442695
        %v556 = vpow.pop %v555
        %v557 = vmul.f32 %v347, 1.442695
        %v558 = vpow.pop %v557
        %v559 = vmul.f32 %v348, 1.442695
        %v560 = vpow.pop %v559
        %v561 = vmul.f32 %v349, 1.442695
        %v562 = vpow.pop %v561
        %v563 = vmul.f32 %v350, 1.442695
        %v564 = vpow.pop %v563
        %v565 = vmul.f32 %v351, 1.442695
        %v566 = vpow.pop %v565
        %v567 = vmul.f32 %v352, 1.442695
        %v568 = vpow.pop %v567
        %v569 = vmul.f32 %v353, 1.442695
        %v570 = vpow.pop %v569
        %v571 = vmul.f32 %v354, 1.442695
        %v572 = vpow.pop %v571
        %v573 = vmul.f32 %v355, 1.442695
        %v574 = vpow.pop %v573
        %v575 = vmul.f32 %v356, 1.442695
        %v576 = vpow.pop %v575
        %v577 = vmul.f32 %v357, 1.442695
        %v578 = vpow.pop %v577
        %v579 = vmul.f32 %v358, 1.442695
        %v580 = vpow.pop %v579
        %v581 = vmul.f32 %v359, 1.442695
        %v582 = vpow.pop %v581
        %v583 = vmul.f32 %v360, 1.442695
        %v584 = vpow.pop %v583
        %v585 = vmul.f32 %v361, 1.442695
        %v586 = vpow.pop %v585
        %v587 = vmul.f32 %v362, 1.442695
        %v588 = vpow.pop %v587
        %v589 = vmul.f32 %v363, 1.442695
        %v590 = vpow.pop %v589
        %v591 = vmul.f32 %v364, 1.442695
        %v592 = vpow.pop %v591
        %v593 = vmul.f32 %v365, 1.442695
        %v594 = vpow.pop %v593
        %v595 = vmul.f32 %v366, 1.442695
        %v596 = vpow.pop %v595
        %v597 = vmul.f32 %v367, 1.442695
        %v598 = vpow.pop %v597
        %v599 = vmul.f32 %v368, 1.442695
        %v600 = vpow.pop %v599
        %v601 = vmul.f32 %v369, 1.442695
        %v602 = vpow.pop %v601
        %v603 = vmul.f32 %v370, 1.442695
        %v604 = vpow.pop %v603
        %v605 = vmul.f32 %v371, 1.442695
        %v606 = vpow.pop %v605
        %v607 = vmul.f32 %v372, 1.442695
        %v608 = vpow.pop %v607
        %v609 = vmul.f32 %v373, 1.442695
        %v610 = vpow.pop %v609
        %v611 = vmul.f32 %v374, 1.442695
        %v612 = vpow.pop %v611
        %v613 = vmul.f32 %v375, 1.442695
        %v614 = vpow.pop %v613
        %v615 = vmul.f32 %v376, 1.442695
        %v616 = vpow.pop %v615
        %v617 = vmul.f32 %v377, 1.442695
        %v618 = vpow.pop %v617
        %v619 = vmul.f32 %v378, 1.442695
        %v620 = vpow.pop %v619
        %v621 = vmul.f32 %v379, 1.442695
        %v622 = vpow.pop %v621
        %v623 = vmul.f32 %v380, 1.442695
        %v624 = vpow.pop %v623
        %v625 = vmul.f32 %v381, 1.442695
        %v626 = vpow.pop %v625
        %v627 = vmul.f32 %v382, 1.442695
        %v628 = vpow.pop %v627
        %v629 = vmul.f32 %v383, 1.442695
        %v630 = vpow.pop %v629
        %v631 = vmul.f32 %v384, 1.442695
        %v632 = vpow.pop %v631
        %v633 = vmul.f32 %v385, 1.442695
        %v634 = vpow.pop %v633
        %v635 = vmul.f32 %v386, 1.442695
        %v636 = vpow.pop %v635
        %v637 = vmul.f32 %v387, 1.442695
        %v638 = vpow.pop %v637
        %v639 = vmul.f32 %v388, 1.442695
        %v640 = vpow.pop %v639
        %v641 = vmul.f32 %v389, 1.442695
        %v642 = vpow.pop %v641
        %v643 = vmul.f32 %v390, 1.442695
        %v644 = vpow.pop %v643
        %v645 = vmul.f32 %v391, 1.442695
        %v646 = vpow.pop %v645
        %v647 = vmul.f32 %v392, 1.442695
        %v648 = vpow.pop %v647
        %v649 = vadd.f32 %v394, 2.0
        %v650 = vadd.f32 %v396, 2.0
        %v651 = vadd.f32 %v398, 2.0
        %v652 = vadd.f32 %v400, 2.0
        %v653 = vadd.f32 %v402, 2.0
        %v654 = vadd.f32 %v404, 2.0
        %v655 = vadd.f32 %v406, 2.0
        %v656 = vadd.f32 %v408, 2.0
        %v657 = vadd.f32 %v410, 2.0
        %v658 = vadd.f32 %v412, 2.0
        %v659 = vadd.f32 %v414, 2.0
        %v660 = vadd.f32 %v416, 2.0
        %v661 = vadd.f32 %v418, 2.0
        %v662 = vadd.f32 %v420, 2.0
        %v663 = vadd.f32 %v422, 2.0
        %v664 = vadd.f32 %v424, 2.0
        %v665 = vadd.f32 %v426, 2.0
        %v666 = vadd.f32 %v428, 2.0
        %v667 = vadd.f32 %v430, 2.0
        %v668 = vadd.f32 %v432, 2.0
        %v669 = vadd.f32 %v434, 2.0
        %v670 = vadd.f32 %v436, 2.0
        %v671 = vadd.f32 %v438, 2.0
        %v672 = vadd.f32 %v440, 2.0
        %v673 = vadd.f32 %v442, 2.0
        %v674 = vadd.f32 %v444, 2.0
        %v675 = vadd.f32 %v446, 2.0
        %v676 = vadd.f32 %v448, 2.0
        %v677 = vadd.f32 %v450, 2.0
        %v678 = vadd.f32 %v452, 2.0
        %v679 = vadd.f32 %v454, 2.0
        %v680 = vadd.f32 %v456, 2.0
        %v681 = vadd.f32 %v458, 2.0
        %v682 = vadd.f32 %v460, 2.0
        %v683 = vadd.f32 %v462, 2.0
        %v684 = vadd.f32 %v464, 2.0
        %v685 = vadd.f32 %v466, 2.0
        %v686 = vadd.f32 %v468, 2.0
        %v687 = vadd.f32 %v470, 2.0
        %v688 = vadd.f32 %v472, 2.0
        %v689 = vadd.f32 %v474, 2.0
        %v690 = vadd.f32 %v476, 2.0
        %v691 = vadd.f32 %v478, 2.0
        %v692 = vadd.f32 %v480, 2.0
        %v693 = vadd.f32 %v482, 2.0
        %v694 = vadd.f32 %v484, 2.0
        %v695 = vadd.f32 %v486, 2.0
        %v696 = vadd.f32 %v488, 2.0
        %v697 = vadd.f32 %v490, 2.0
        %v698 = vadd.f32 %v492, 2.0
        %v699 = vadd.f32 %v494, 2.0
        %v700 = vadd.f32 %v496, 2.0
        %v701 = vadd.f32 %v498, 2.0
        %v702 = vadd.f32 %v500, 2.0
        %v703 = vadd.f32 %v502, 2.0
        %v704 = vadd.f32 %v504, 2.0
        %v705 = vadd.f32 %v506, 2.0
        %v706 = vadd.f32 %v508, 2.0
        %v707 = vadd.f32 %v510, 2.0
        %v708 = vadd.f32 %v512, 2.0
        %v709 = vadd.f32 %v514, 2.0
        %v710 = vadd.f32 %v516, 2.0
        %v711 = vadd.f32 %v518, 2.0
        %v712 = vadd.f32 %v520, 2.0
        %v713 = vadd.f32 %v522, 2.0
        %v714 = vadd.f32 %v524, 2.0
        %v715 = vadd.f32 %v526, 2.0
        %v716 = vadd.f32 %v528, 2.0
        %v717 = vadd.f32 %v530, 2.0
        %v718 = vadd.f32 %v532, 2.0
        %v719 = vadd.f32 %v534, 2.0
        %v720 = vadd.f32 %v536, 2.0
        %v721 = vadd.f32 %v538, 2.0
        %v722 = vadd.f32 %v540, 2.0
        %v723 = vadd.f32 %v542, 2.0
        %v724 = vadd.f32 %v544, 2.0
        %v725 = vadd.f32 %v546, 2.0
        %v726 = vadd.f32 %v548, 2.0
        %v727 = vadd.f32 %v550, 2.0
        %v728 = vadd.f32 %v552, 2.0
        %v729 = vadd.f32 %v554, 2.0
        %v730 = vadd.f32 %v556, 2.0
        %v731 = vadd.f32 %v558, 2.0
        %v732 = vadd.f32 %v560, 2.0
        %v733 = vadd.f32 %v562, 2.0
        %v734 = vadd.f32 %v564, 2.0
        %v735 = vadd.f32 %v566, 2.0
        %v736 = vadd.f32 %v568, 2.0
        %v737 = vadd.f32 %v570, 2.0
        %v738 = vadd.f32 %v572, 2.0
        %v739 = vadd.f32 %v574, 2.0
        %v740 = vadd.f32 %v576, 2.0
        %v741 = vadd.f32 %v578, 2.0
        %v742 = vadd.f32 %v580, 2.0
        %v743 = vadd.f32 %v582, 2.0
        %v744 = vadd.f32 %v584, 2.0
        %v745 = vadd.f32 %v586, 2.0
        %v746 = vadd.f32 %v588, 2.0
        %v747 = vadd.f32 %v590, 2.0
        %v748 = vadd.f32 %v592, 2.0
        %v749 = vadd.f32 %v594, 2.0
        %v750 = vadd.f32 %v596, 2.0
        %v751 = vadd.f32 %v598, 2.0
        %v752 = vadd.f32 %v600, 2.0
        %v753 = vadd.f32 %v602, 2.0
        %v754 = vadd.f32 %v604, 2.0
        %v755 = vadd.f32 %v606, 2.0
        %v756 = vadd.f32 %v608, 2.0
        %v757 = vadd.f32 %v610, 2.0
        %v758 = vadd.f32 %v612, 2.0
        %v759 = vadd.f32 %v614, 2.0
        %v760 = vadd.f32 %v616, 2.0
        %v761 = vadd.f32 %v618, 2.0
        %v762 = vadd.f32 %v620, 2.0
        %v763 = vadd.f32 %v622, 2.0
        %v764 = vadd.f32 %v624, 2.0
        %v765 = vadd.f32 %v626, 2.0
        %v766 = vadd.f32 %v628, 2.0
        %v767 = vadd.f32 %v630, 2.0
        %v768 = vadd.f32 %v632, 2.0
        %v769 = vadd.f32 %v634, 2.0
        %v770 = vadd.f32 %v636, 2.0
        %v771 = vadd.f32 %v638, 2.0
        %v772 = vadd.f32 %v640, 2.0
        %v773 = vadd.f32 %v642, 2.0
        %v774 = vadd.f32 %v644, 2.0
        %v775 = vadd.f32 %v646, 2.0
        %v776 = vadd.f32 %v648, 2.0
        %v777 = vmul.f32 %v394, %v649
        %v778 = vmul.f32 %v396, %v650
        %v779 = vmul.f32 %v398, %v651
        %v780 = vmul.f32 %v400, %v652
        %v781 = vmul.f32 %v402, %v653
        %v782 = vmul.f32 %v404, %v654
        %v783 = vmul.f32 %v406, %v655
        %v784 = vmul.f32 %v408, %v656
        %v785 = vmul.f32 %v410, %v657
        %v786 = vmul.f32 %v412, %v658
        %v787 = vmul.f32 %v414, %v659
        %v788 = vmul.f32 %v416, %v660
        %v789 = vmul.f32 %v418, %v661
        %v790 = vmul.f32 %v420, %v662
        %v791 = vmul.f32 %v422, %v663
        %v792 = vmul.f32 %v424, %v664
        %v793 = vmul.f32 %v426, %v665
        %v794 = vmul.f32 %v428, %v666
        %v795 = vmul.f32 %v430, %v667
        %v796 = vmul.f32 %v432, %v668
        %v797 = vmul.f32 %v434, %v669
        %v798 = vmul.f32 %v436, %v670
        %v799 = vmul.f32 %v438, %v671
        %v800 = vmul.f32 %v440, %v672
        %v801 = vmul.f32 %v442, %v673
        %v802 = vmul.f32 %v444, %v674
        %v803 = vmul.f32 %v446, %v675
        %v804 = vmul.f32 %v448, %v676
        %v805 = vmul.f32 %v450, %v677
        %v806 = vmul.f32 %v452, %v678
        %v807 = vmul.f32 %v454, %v679
        %v808 = vmul.f32 %v456, %v680
        %v809 = vmul.f32 %v458, %v681
        %v810 = vmul.f32 %v460, %v682
        %v811 = vmul.f32 %v462, %v683
        %v812 = vmul.f32 %v464, %v684
        %v813 = vmul.f32 %v466, %v685
        %v814 = vmul.f32 %v468, %v686
        %v815 = vmul.f32 %v470, %v687
        %v816 = vmul.f32 %v472, %v688
        %v817 = vmul.f32 %v474, %v689
        %v818 = vmul.f32 %v476, %v690
        %v819 = vmul.f32 %v478, %v691
        %v820 = vmul.f32 %v480, %v692
        %v821 = vmul.f32 %v482, %v693
        %v822 = vmul.f32 %v484, %v694
        %v823 = vmul.f32 %v486, %v695
        %v824 = vmul.f32 %v488, %v696
        %v825 = vmul.f32 %v490, %v697
        %v826 = vmul.f32 %v492, %v698
        %v827 = vmul.f32 %v494, %v699
        %v828 = vmul.f32 %v496, %v700
        %v829 = vmul.f32 %v498, %v701
        %v830 = vmul.f32 %v500, %v702
        %v831 = vmul.f32 %v502, %v703
        %v832 = vmul.f32 %v504, %v704
        %v833 = vmul.f32 %v506, %v705
        %v834 = vmul.f32 %v508, %v706
        %v835 = vmul.f32 %v510, %v707
        %v836 = vmul.f32 %v512, %v708
        %v837 = vmul.f32 %v514, %v709
        %v838 = vmul.f32 %v516, %v710
        %v839 = vmul.f32 %v518, %v711
        %v840 = vmul.f32 %v520, %v712
        %v841 = vmul.f32 %v522, %v713
        %v842 = vmul.f32 %v524, %v714
        %v843 = vmul.f32 %v526, %v715
        %v844 = vmul.f32 %v528, %v716
        %v845 = vmul.f32 %v530, %v717
        %v846 = vmul.f32 %v532, %v718
        %v847 = vmul.f32 %v534, %v719
        %v848 = vmul.f32 %v536, %v720
        %v849 = vmul.f32 %v538, %v721
        %v850 = vmul.f32 %v540, %v722
        %v851 = vmul.f32 %v542, %v723
        %v852 = vmul.f32 %v544, %v724
        %v853 = vmul.f32 %v546, %v725
        %v854 = vmul.f32 %v548, %v726
        %v855 = vmul.f32 %v550, %v727
        %v856 = vmul.f32 %v552, %v728
        %v857 = vmul.f32 %v554, %v729
        %v858 = vmul.f32 %v556, %v730
        %v859 = vmul.f32 %v558, %v731
        %v860 = vmul.f32 %v560, %v732
        %v861 = vmul.f32 %v562, %v733
        %v862 = vmul.f32 %v564, %v734
        %v863 = vmul.f32 %v566, %v735
        %v864 = vmul.f32 %v568, %v736
        %v865 = vmul.f32 %v570, %v737
        %v866 = vmul.f32 %v572, %v738
        %v867 = vmul.f32 %v574, %v739
        %v868 = vmul.f32 %v576, %v740
        %v869 = vmul.f32 %v578, %v741
        %v870 = vmul.f32 %v580, %v742
        %v871 = vmul.f32 %v582, %v743
        %v872 = vmul.f32 %v584, %v744
        %v873 = vmul.f32 %v586, %v745
        %v874 = vmul.f32 %v588, %v746
        %v875 = vmul.f32 %v590, %v747
        %v876 = vmul.f32 %v592, %v748
        %v877 = vmul.f32 %v594, %v749
        %v878 = vmul.f32 %v596, %v750
        %v879 = vmul.f32 %v598, %v751
        %v880 = vmul.f32 %v600, %v752
        %v881 = vmul.f32 %v602, %v753
        %v882 = vmul.f32 %v604, %v754
        %v883 = vmul.f32 %v606, %v755
        %v884 = vmul.f32 %v608, %v756
        %v885 = vmul.f32 %v610, %v757
        %v886 = vmul.f32 %v612, %v758
        %v887 = vmul.f32 %v614, %v759
        %v888 = vmul.f32 %v616, %v760
        %v889 = vmul.f32 %v618, %v761
        %v890 = vmul.f32 %v620, %v762
        %v891 = vmul.f32 %v622, %v763
        %v892 = vmul.f32 %v624, %v764
        %v893 = vmul.f32 %v626, %v765
        %v894 = vmul.f32 %v628, %v766
        %v895 = vmul.f32 %v630, %v767
        %v896 = vmul.f32 %v632, %v768
        %v897 = vmul.f32 %v634, %v769
        %v898 = vmul.f32 %v636, %v770
        %v899 = vmul.f32 %v638, %v771
        %v900 = vmul.f32 %v640, %v772
        %v901 = vmul.f32 %v642, %v773
        %v902 = vmul.f32 %v644, %v774
        %v903 = vmul.f32 %v646, %v775
        %v904 = vmul.f32 %v648, %v776
        %v905 = vadd.f32 %v777, 2.0
        %v906 = vadd.f32 %v778, 2.0
        %v907 = vadd.f32 %v779, 2.0
        %v908 = vadd.f32 %v780, 2.0
        %v909 = vadd.f32 %v781, 2.0
        %v910 = vadd.f32 %v782, 2.0
        %v911 = vadd.f32 %v783, 2.0
        %v912 = vadd.f32 %v784, 2.0
        %v913 = vadd.f32 %v785, 2.0
        %v914 = vadd.f32 %v786, 2.0
        %v915 = vadd.f32 %v787, 2.0
        %v916 = vadd.f32 %v788, 2.0
        %v917 = vadd.f32 %v789, 2.0
        %v918 = vadd.f32 %v790, 2.0
        %v919 = vadd.f32 %v791, 2.0
        %v920 = vadd.f32 %v792, 2.0
        %v921 = vadd.f32 %v793, 2.0
        %v922 = vadd.f32 %v794, 2.0
        %v923 = vadd.f32 %v795, 2.0
        %v924 = vadd.f32 %v796, 2.0
        %v925 = vadd.f32 %v797, 2.0
        %v926 = vadd.f32 %v798, 2.0
        %v927 = vadd.f32 %v799, 2.0
        %v928 = vadd.f32 %v800, 2.0
        %v929 = vadd.f32 %v801, 2.0
        %v930 = vadd.f32 %v802, 2.0
        %v931 = vadd.f32 %v803, 2.0
        %v932 = vadd.f32 %v804, 2.0
        %v933 = vadd.f32 %v805, 2.0
        %v934 = vadd.f32 %v806, 2.0
        %v935 = vadd.f32 %v807, 2.0
        %v936 = vadd.f32 %v808, 2.0
        %v937 = vadd.f32 %v809, 2.0
        %v938 = vadd.f32 %v810, 2.0
        %v939 = vadd.f32 %v811, 2.0
        %v940 = vadd.f32 %v812, 2.0
        %v941 = vadd.f32 %v813, 2.0
        %v942 = vadd.f32 %v814, 2.0
        %v943 = vadd.f32 %v815, 2.0
        %v944 = vadd.f32 %v816, 2.0
        %v945 = vadd.f32 %v817, 2.0
        %v946 = vadd.f32 %v818, 2.0
        %v947 = vadd.f32 %v819, 2.0
        %v948 = vadd.f32 %v820, 2.0
        %v949 = vadd.f32 %v821, 2.0
        %v950 = vadd.f32 %v822, 2.0
        %v951 = vadd.f32 %v823, 2.0
        %v952 = vadd.f32 %v824, 2.0
        %v953 = vadd.f32 %v825, 2.0
        %v954 = vadd.f32 %v826, 2.0
        %v955 = vadd.f32 %v827, 2.0
        %v956 = vadd.f32 %v828, 2.0
        %v957 = vadd.f32 %v829, 2.0
        %v958 = vadd.f32 %v830, 2.0
        %v959 = vadd.f32 %v831, 2.0
        %v960 = vadd.f32 %v832, 2.0
        %v961 = vadd.f32 %v833, 2.0
        %v962 = vadd.f32 %v834, 2.0
        %v963 = vadd.f32 %v835, 2.0
        %v964 = vadd.f32 %v836, 2.0
        %v965 = vadd.f32 %v837, 2.0
        %v966 = vadd.f32 %v838, 2.0
        %v967 = vadd.f32 %v839, 2.0
        %v968 = vadd.f32 %v840, 2.0
        %v969 = vadd.f32 %v841, 2.0
        %v970 = vadd.f32 %v842, 2.0
        %v971 = vadd.f32 %v843, 2.0
        %v972 = vadd.f32 %v844, 2.0
        %v973 = vadd.f32 %v845, 2.0
        %v974 = vadd.f32 %v846, 2.0
        %v975 = vadd.f32 %v847, 2.0
        %v976 = vadd.f32 %v848, 2.0
        %v977 = vadd.f32 %v849, 2.0
        %v978 = vadd.f32 %v850, 2.0
        %v979 = vadd.f32 %v851, 2.0
        %v980 = vadd.f32 %v852, 2.0
        %v981 = vadd.f32 %v853, 2.0
        %v982 = vadd.f32 %v854, 2.0
        %v983 = vadd.f32 %v855, 2.0
        %v984 = vadd.f32 %v856, 2.0
        %v985 = vadd.f32 %v857, 2.0
        %v986 = vadd.f32 %v858, 2.0
        %v987 = vadd.f32 %v859, 2.0
        %v988 = vadd.f32 %v860, 2.0
        %v989 = vadd.f32 %v861, 2.0
        %v990 = vadd.f32 %v862, 2.0
        %v991 = vadd.f32 %v863, 2.0
        %v992 = vadd.f32 %v864, 2.0
        %v993 = vadd.f32 %v865, 2.0
        %v994 = vadd.f32 %v866, 2.0
        %v995 = vadd.f32 %v867, 2.0
        %v996 = vadd.f32 %v868, 2.0
        %v997 = vadd.f32 %v869, 2.0
        %v998 = vadd.f32 %v870, 2.0
        %v999 = vadd.f32 %v871, 2.0
        %v1000 = vadd.f32 %v872, 2.0
        %v1001 = vadd.f32 %v873, 2.0
        %v1002 = vadd.f32 %v874, 2.0
        %v1003 = vadd.f32 %v875, 2.0
        %v1004 = vadd.f32 %v876, 2.0
        %v1005 = vadd.f32 %v877, 2.0
        %v1006 = vadd.f32 %v878, 2.0
        %v1007 = vadd.f32 %v879, 2.0
        %v1008 = vadd.f32 %v880, 2.0
        %v1009 = vadd.f32 %v881, 2.0
        %v1010 = vadd.f32 %v882, 2.0
        %v1011 = vadd.f32 %v883, 2.0
        %v1012 = vadd.f32 %v884, 2.0
        %v1013 = vadd.f32 %v885, 2.0
        %v1014 = vadd.f32 %v886, 2.0
        %v1015 = vadd.f32 %v887, 2.0
        %v1016 = vadd.f32 %v888, 2.0
        %v1017 = vadd.f32 %v889, 2.0
        %v1018 = vadd.f32 %v890, 2.0
        %v1019 = vadd.f32 %v891, 2.0
        %v1020 = vadd.f32 %v892, 2.0
        %v1021 = vadd.f32 %v893, 2.0
        %v1022 = vadd.f32 %v894, 2.0
        %v1023 = vadd.f32 %v895, 2.0
        %v1024 = vadd.f32 %v896, 2.0
        %v1025 = vadd.f32 %v897, 2.0
        %v1026 = vadd.f32 %v898, 2.0
        %v1027 = vadd.f32 %v899, 2.0
        %v1028 = vadd.f32 %v900, 2.0
        %v1029 = vadd.f32 %v901, 2.0
        %v1030 = vadd.f32 %v902, 2.0
        %v1031 = vadd.f32 %v903, 2.0
        %v1032 = vadd.f32 %v904, 2.0
        %v1033 = vrcp.pop %v905
        %v1034 = vmul.f32 %v777, %v1033
        %v1035 = vrcp.pop %v906
        %v1036 = vmul.f32 %v778, %v1035
        %v1037 = vrcp.pop %v907
        %v1038 = vmul.f32 %v779, %v1037
        %v1039 = vrcp.pop %v908
        %v1040 = vmul.f32 %v780, %v1039
        %v1041 = vrcp.pop %v909
        %v1042 = vmul.f32 %v781, %v1041
        %v1043 = vrcp.pop %v910
        %v1044 = vmul.f32 %v782, %v1043
        %v1045 = vrcp.pop %v911
        %v1046 = vmul.f32 %v783, %v1045
        %v1047 = vrcp.pop %v912
        %v1048 = vmul.f32 %v784, %v1047
        %v1049 = vrcp.pop %v913
        %v1050 = vmul.f32 %v785, %v1049
        %v1051 = vrcp.pop %v914
        %v1052 = vmul.f32 %v786, %v1051
        %v1053 = vrcp.pop %v915
        %v1054 = vmul.f32 %v787, %v1053
        %v1055 = vrcp.pop %v916
        %v1056 = vmul.f32 %v788, %v1055
        %v1057 = vrcp.pop %v917
        %v1058 = vmul.f32 %v789, %v1057
        %v1059 = vrcp.pop %v918
        %v1060 = vmul.f32 %v790, %v1059
        %v1061 = vrcp.pop %v919
        %v1062 = vmul.f32 %v791, %v1061
        %v1063 = vrcp.pop %v920
        %v1064 = vmul.f32 %v792, %v1063
        %v1065 = vrcp.pop %v921
        %v1066 = vmul.f32 %v793, %v1065
        %v1067 = vrcp.pop %v922
        %v1068 = vmul.f32 %v794, %v1067
        %v1069 = vrcp.pop %v923
        %v1070 = vmul.f32 %v795, %v1069
        %v1071 = vrcp.pop %v924
        %v1072 = vmul.f32 %v796, %v1071
        %v1073 = vrcp.pop %v925
        %v1074 = vmul.f32 %v797, %v1073
        %v1075 = vrcp.pop %v926
        %v1076 = vmul.f32 %v798, %v1075
        %v1077 = vrcp.pop %v927
        %v1078 = vmul.f32 %v799, %v1077
        %v1079 = vrcp.pop %v928
        %v1080 = vmul.f32 %v800, %v1079
        %v1081 = vrcp.pop %v929
        %v1082 = vmul.f32 %v801, %v1081
        %v1083 = vrcp.pop %v930
        %v1084 = vmul.f32 %v802, %v1083
        %v1085 = vrcp.pop %v931
        %v1086 = vmul.f32 %v803, %v1085
        %v1087 = vrcp.pop %v932
        %v1088 = vmul.f32 %v804, %v1087
        %v1089 = vrcp.pop %v933
        %v1090 = vmul.f32 %v805, %v1089
        %v1091 = vrcp.pop %v934
        %v1092 = vmul.f32 %v806, %v1091
        %v1093 = vrcp.pop %v935
        %v1094 = vmul.f32 %v807, %v1093
        %v1095 = vrcp.pop %v936
        %v1096 = vmul.f32 %v808, %v1095
        %v1097 = vrcp.pop %v937
        %v1098 = vmul.f32 %v809, %v1097
        %v1099 = vrcp.pop %v938
        %v1100 = vmul.f32 %v810, %v1099
        %v1101 = vrcp.pop %v939
        %v1102 = vmul.f32 %v811, %v1101
        %v1103 = vrcp.pop %v940
        %v1104 = vmul.f32 %v812, %v1103
        %v1105 = vrcp.pop %v941
        %v1106 = vmul.f32 %v813, %v1105
        %v1107 = vrcp.pop %v942
        %v1108 = vmul.f32 %v814, %v1107
        %v1109 = vrcp.pop %v943
        %v1110 = vmul.f32 %v815, %v1109
        %v1111 = vrcp.pop %v944
        %v1112 = vmul.f32 %v816, %v1111
        %v1113 = vrcp.pop %v945
        %v1114 = vmul.f32 %v817, %v1113
        %v1115 = vrcp.pop %v946
        %v1116 = vmul.f32 %v818, %v1115
        %v1117 = vrcp.pop %v947
        %v1118 = vmul.f32 %v819, %v1117
        %v1119 = vrcp.pop %v948
        %v1120 = vmul.f32 %v820, %v1119
        %v1121 = vrcp.pop %v949
        %v1122 = vmul.f32 %v821, %v1121
        %v1123 = vrcp.pop %v950
        %v1124 = vmul.f32 %v822, %v1123
        %v1125 = vrcp.pop %v951
        %v1126 = vmul.f32 %v823, %v1125
        %v1127 = vrcp.pop %v952
        %v1128 = vmul.f32 %v824, %v1127
        %v1129 = vrcp.pop %v953
        %v1130 = vmul.f32 %v825, %v1129
        %v1131 = vrcp.pop %v954
        %v1132 = vmul.f32 %v826, %v1131
        %v1133 = vrcp.pop %v955
        %v1134 = vmul.f32 %v827, %v1133
        %v1135 = vrcp.pop %v956
        %v1136 = vmul.f32 %v828, %v1135
        %v1137 = vrcp.pop %v957
        %v1138 = vmul.f32 %v829, %v1137
        %v1139 = vrcp.pop %v958
        %v1140 = vmul.f32 %v830, %v1139
        %v1141 = vrcp.pop %v959
        %v1142 = vmul.f32 %v831, %v1141
        %v1143 = vrcp.pop %v960
        %v1144 = vmul.f32 %v832, %v1143
        %v1145 = vrcp.pop %v961
        %v1146 = vmul.f32 %v833, %v1145
        %v1147 = vrcp.pop %v962
        %v1148 = vmul.f32 %v834, %v1147
        %v1149 = vrcp.pop %v963
        %v1150 = vmul.f32 %v835, %v1149
        %v1151 = vrcp.pop %v964
        %v1152 = vmul.f32 %v836, %v1151
        %v1153 = vrcp.pop %v965
        %v1154 = vmul.f32 %v837, %v1153
        %v1155 = vrcp.pop %v966
        %v1156 = vmul.f32 %v838, %v1155
        %v1157 = vrcp.pop %v967
        %v1158 = vmul.f32 %v839, %v1157
        %v1159 = vrcp.pop %v968
        %v1160 = vmul.f32 %v840, %v1159
        %v1161 = vrcp.pop %v969
        %v1162 = vmul.f32 %v841, %v1161
        %v1163 = vrcp.pop %v970
        %v1164 = vmul.f32 %v842, %v1163
        %v1165 = vrcp.pop %v971
        %v1166 = vmul.f32 %v843, %v1165
        %v1167 = vrcp.pop %v972
        %v1168 = vmul.f32 %v844, %v1167
        %v1169 = vrcp.pop %v973
        %v1170 = vmul.f32 %v845, %v1169
        %v1171 = vrcp.pop %v974
        %v1172 = vmul.f32 %v846, %v1171
        %v1173 = vrcp.pop %v975
        %v1174 = vmul.f32 %v847, %v1173
        %v1175 = vrcp.pop %v976
        %v1176 = vmul.f32 %v848, %v1175
        %v1177 = vrcp.pop %v977
        %v1178 = vmul.f32 %v849, %v1177
        %v1179 = vrcp.pop %v978
        %v1180 = vmul.f32 %v850, %v1179
        %v1181 = vrcp.pop %v979
        %v1182 = vmul.f32 %v851, %v1181
        %v1183 = vrcp.pop %v980
        %v1184 = vmul.f32 %v852, %v1183
        %v1185 = vrcp.pop %v981
        %v1186 = vmul.f32 %v853, %v1185
        %v1187 = vrcp.pop %v982
        %v1188 = vmul.f32 %v854, %v1187
        %v1189 = vrcp.pop %v983
        %v1190 = vmul.f32 %v855, %v1189
        %v1191 = vrcp.pop %v984
        %v1192 = vmul.f32 %v856, %v1191
        %v1193 = vrcp.pop %v985
        %v1194 = vmul.f32 %v857, %v1193
        %v1195 = vrcp.pop %v986
        %v1196 = vmul.f32 %v858, %v1195
        %v1197 = vrcp.pop %v987
        %v1198 = vmul.f32 %v859, %v1197
        %v1199 = vrcp.pop %v988
        %v1200 = vmul.f32 %v860, %v1199
        %v1201 = vrcp.pop %v989
        %v1202 = vmul.f32 %v861, %v1201
        %v1203 = vrcp.pop %v990
        %v1204 = vmul.f32 %v862, %v1203
        %v1205 = vrcp.pop %v991
        %v1206 = vmul.f32 %v863, %v1205
        %v1207 = vrcp.pop %v992
        %v1208 = vmul.f32 %v864, %v1207
        %v1209 = vrcp.pop %v993
        %v1210 = vmul.f32 %v865, %v1209
        %v1211 = vrcp.pop %v994
        %v1212 = vmul.f32 %v866, %v1211
        %v1213 = vrcp.pop %v995
        %v1214 = vmul.f32 %v867, %v1213
        %v1215 = vrcp.pop %v996
        %v1216 = vmul.f32 %v868, %v1215
        %v1217 = vrcp.pop %v997
        %v1218 = vmul.f32 %v869, %v1217
        %v1219 = vrcp.pop %v998
        %v1220 = vmul.f32 %v870, %v1219
        %v1221 = vrcp.pop %v999
        %v1222 = vmul.f32 %v871, %v1221
        %v1223 = vrcp.pop %v1000
        %v1224 = vmul.f32 %v872, %v1223
        %v1225 = vrcp.pop %v1001
        %v1226 = vmul.f32 %v873, %v1225
        %v1227 = vrcp.pop %v1002
        %v1228 = vmul.f32 %v874, %v1227
        %v1229 = vrcp.pop %v1003
        %v1230 = vmul.f32 %v875, %v1229
        %v1231 = vrcp.pop %v1004
        %v1232 = vmul.f32 %v876, %v1231
        %v1233 = vrcp.pop %v1005
        %v1234 = vmul.f32 %v877, %v1233
        %v1235 = vrcp.pop %v1006
        %v1236 = vmul.f32 %v878, %v1235
        %v1237 = vrcp.pop %v1007
        %v1238 = vmul.f32 %v879, %v1237
        %v1239 = vrcp.pop %v1008
        %v1240 = vmul.f32 %v880, %v1239
        %v1241 = vrcp.pop %v1009
        %v1242 = vmul.f32 %v881, %v1241
        %v1243 = vrcp.pop %v1010
        %v1244 = vmul.f32 %v882, %v1243
        %v1245 = vrcp.pop %v1011
        %v1246 = vmul.f32 %v883, %v1245
        %v1247 = vrcp.pop %v1012
        %v1248 = vmul.f32 %v884, %v1247
        %v1249 = vrcp.pop %v1013
        %v1250 = vmul.f32 %v885, %v1249
        %v1251 = vrcp.pop %v1014
        %v1252 = vmul.f32 %v886, %v1251
        %v1253 = vrcp.pop %v1015
        %v1254 = vmul.f32 %v887, %v1253
        %v1255 = vrcp.pop %v1016
        %v1256 = vmul.f32 %v888, %v1255
        %v1257 = vrcp.pop %v1017
        %v1258 = vmul.f32 %v889, %v1257
        %v1259 = vrcp.pop %v1018
        %v1260 = vmul.f32 %v890, %v1259
        %v1261 = vrcp.pop %v1019
        %v1262 = vmul.f32 %v891, %v1261
        %v1263 = vrcp.pop %v1020
        %v1264 = vmul.f32 %v892, %v1263
        %v1265 = vrcp.pop %v1021
        %v1266 = vmul.f32 %v893, %v1265
        %v1267 = vrcp.pop %v1022
        %v1268 = vmul.f32 %v894, %v1267
        %v1269 = vrcp.pop %v1023
        %v1270 = vmul.f32 %v895, %v1269
        %v1271 = vrcp.pop %v1024
        %v1272 = vmul.f32 %v896, %v1271
        %v1273 = vrcp.pop %v1025
        %v1274 = vmul.f32 %v897, %v1273
        %v1275 = vrcp.pop %v1026
        %v1276 = vmul.f32 %v898, %v1275
        %v1277 = vrcp.pop %v1027
        %v1278 = vmul.f32 %v899, %v1277
        %v1279 = vrcp.pop %v1028
        %v1280 = vmul.f32 %v900, %v1279
        %v1281 = vrcp.pop %v1029
        %v1282 = vmul.f32 %v901, %v1281
        %v1283 = vrcp.pop %v1030
        %v1284 = vmul.f32 %v902, %v1283
        %v1285 = vrcp.pop %v1031
        %v1286 = vmul.f32 %v903, %v1285
        %v1287 = vrcp.pop %v1032
        %v1288 = vmul.f32 %v904, %v1287
        %vm1289 = vcmp.gt.f32.partialorder %v137, 20.0
        %vm1290 = vcmp.gt.f32.partialorder %v138, 20.0
        %vm1291 = vcmp.gt.f32.partialorder %v139, 20.0
        %vm1292 = vcmp.gt.f32.partialorder %v140, 20.0
        %vm1293 = vcmp.gt.f32.partialorder %v141, 20.0
        %vm1294 = vcmp.gt.f32.partialorder %v142, 20.0
        %vm1295 = vcmp.gt.f32.partialorder %v143, 20.0
        %vm1296 = vcmp.gt.f32.partialorder %v144, 20.0
        %vm1297 = vcmp.gt.f32.partialorder %v145, 20.0
        %vm1298 = vcmp.gt.f32.partialorder %v146, 20.0
        %vm1299 = vcmp.gt.f32.partialorder %v147, 20.0
        %vm1300 = vcmp.gt.f32.partialorder %v148, 20.0
        %vm1301 = vcmp.gt.f32.partialorder %v149, 20.0
        %vm1302 = vcmp.gt.f32.partialorder %v150, 20.0
        %vm1303 = vcmp.gt.f32.partialorder %v151, 20.0
        %vm1304 = vcmp.gt.f32.partialorder %v152, 20.0
        %vm1305 = vcmp.gt.f32.partialorder %v153, 20.0
        %vm1306 = vcmp.gt.f32.partialorder %v154, 20.0
        %vm1307 = vcmp.gt.f32.partialorder %v155, 20.0
        %vm1308 = vcmp.gt.f32.partialorder %v156, 20.0
        %vm1309 = vcmp.gt.f32.partialorder %v157, 20.0
        %vm1310 = vcmp.gt.f32.partialorder %v158, 20.0
        %vm1311 = vcmp.gt.f32.partialorder %v159, 20.0
        %vm1312 = vcmp.gt.f32.partialorder %v160, 20.0
        %vm1313 = vcmp.gt.f32.partialorder %v161, 20.0
        %vm1314 = vcmp.gt.f32.partialorder %v162, 20.0
        %vm1315 = vcmp.gt.f32.partialorder %v163, 20.0
        %vm1316 = vcmp.gt.f32.partialorder %v164, 20.0
        %vm1317 = vcmp.gt.f32.partialorder %v165, 20.0
        %vm1318 = vcmp.gt.f32.partialorder %v166, 20.0
        %vm1319 = vcmp.gt.f32.partialorder %v167, 20.0
        %vm1320 = vcmp.gt.f32.partialorder %v168, 20.0
        %vm1321 = vcmp.gt.f32.partialorder %v169, 20.0
        %vm1322 = vcmp.gt.f32.partialorder %v170, 20.0
        %vm1323 = vcmp.gt.f32.partialorder %v171, 20.0
        %vm1324 = vcmp.gt.f32.partialorder %v172, 20.0
        %vm1325 = vcmp.gt.f32.partialorder %v173, 20.0
        %vm1326 = vcmp.gt.f32.partialorder %v174, 20.0
        %vm1327 = vcmp.gt.f32.partialorder %v175, 20.0
        %vm1328 = vcmp.gt.f32.partialorder %v176, 20.0
        %vm1329 = vcmp.gt.f32.partialorder %v177, 20.0
        %vm1330 = vcmp.gt.f32.partialorder %v178, 20.0
        %vm1331 = vcmp.gt.f32.partialorder %v179, 20.0
        %vm1332 = vcmp.gt.f32.partialorder %v180, 20.0
        %vm1333 = vcmp.gt.f32.partialorder %v181, 20.0
        %vm1334 = vcmp.gt.f32.partialorder %v182, 20.0
        %vm1335 = vcmp.gt.f32.partialorder %v183, 20.0
        %vm1336 = vcmp.gt.f32.partialorder %v184, 20.0
        %vm1337 = vcmp.gt.f32.partialorder %v185, 20.0
        %vm1338 = vcmp.gt.f32.partialorder %v186, 20.0
        %vm1339 = vcmp.gt.f32.partialorder %v187, 20.0
        %vm1340 = vcmp.gt.f32.partialorder %v188, 20.0
        %vm1341 = vcmp.gt.f32.partialorder %v189, 20.0
        %vm1342 = vcmp.gt.f32.partialorder %v190, 20.0
        %vm1343 = vcmp.gt.f32.partialorder %v191, 20.0
        %vm1344 = vcmp.gt.f32.partialorder %v192, 20.0
        %vm1345 = vcmp.gt.f32.partialorder %v193, 20.0
        %vm1346 = vcmp.gt.f32.partialorder %v194, 20.0
        %vm1347 = vcmp.gt.f32.partialorder %v195, 20.0
        %vm1348 = vcmp.gt.f32.partialorder %v196, 20.0
        %vm1349 = vcmp.gt.f32.partialorder %v197, 20.0
        %vm1350 = vcmp.gt.f32.partialorder %v198, 20.0
        %vm1351 = vcmp.gt.f32.partialorder %v199, 20.0
        %vm1352 = vcmp.gt.f32.partialorder %v200, 20.0
        %vm1353 = vcmp.gt.f32.partialorder %v201, 20.0
        %vm1354 = vcmp.gt.f32.partialorder %v202, 20.0
        %vm1355 = vcmp.gt.f32.partialorder %v203, 20.0
        %vm1356 = vcmp.gt.f32.partialorder %v204, 20.0
        %vm1357 = vcmp.gt.f32.partialorder %v205, 20.0
        %vm1358 = vcmp.gt.f32.partialorder %v206, 20.0
        %vm1359 = vcmp.gt.f32.partialorder %v207, 20.0
        %vm1360 = vcmp.gt.f32.partialorder %v208, 20.0
        %vm1361 = vcmp.gt.f32.partialorder %v209, 20.0
        %vm1362 = vcmp.gt.f32.partialorder %v210, 20.0
        %vm1363 = vcmp.gt.f32.partialorder %v211, 20.0
        %vm1364 = vcmp.gt.f32.partialorder %v212, 20.0
        %vm1365 = vcmp.gt.f32.partialorder %v213, 20.0
        %vm1366 = vcmp.gt.f32.partialorder %v214, 20.0
        %vm1367 = vcmp.gt.f32.partialorder %v215, 20.0
        %vm1368 = vcmp.gt.f32.partialorder %v216, 20.0
        %vm1369 = vcmp.gt.f32.partialorder %v217, 20.0
        %vm1370 = vcmp.gt.f32.partialorder %v218, 20.0
        %vm1371 = vcmp.gt.f32.partialorder %v219, 20.0
        %vm1372 = vcmp.gt.f32.partialorder %v220, 20.0
        %vm1373 = vcmp.gt.f32.partialorder %v221, 20.0
        %vm1374 = vcmp.gt.f32.partialorder %v222, 20.0
        %vm1375 = vcmp.gt.f32.partialorder %v223, 20.0
        %vm1376 = vcmp.gt.f32.partialorder %v224, 20.0
        %vm1377 = vcmp.gt.f32.partialorder %v225, 20.0
        %vm1378 = vcmp.gt.f32.partialorder %v226, 20.0
        %vm1379 = vcmp.gt.f32.partialorder %v227, 20.0
        %vm1380 = vcmp.gt.f32.partialorder %v228, 20.0
        %vm1381 = vcmp.gt.f32.partialorder %v229, 20.0
        %vm1382 = vcmp.gt.f32.partialorder %v230, 20.0
        %vm1383 = vcmp.gt.f32.partialorder %v231, 20.0
        %vm1384 = vcmp.gt.f32.partialorder %v232, 20.0
        %vm1385 = vcmp.gt.f32.partialorder %v233, 20.0
        %vm1386 = vcmp.gt.f32.partialorder %v234, 20.0
        %vm1387 = vcmp.gt.f32.partialorder %v235, 20.0
        %vm1388 = vcmp.gt.f32.partialorder %v236, 20.0
        %vm1389 = vcmp.gt.f32.partialorder %v237, 20.0
        %vm1390 = vcmp.gt.f32.partialorder %v238, 20.0
        %vm1391 = vcmp.gt.f32.partialorder %v239, 20.0
        %vm1392 = vcmp.gt.f32.partialorder %v240, 20.0
        %vm1393 = vcmp.gt.f32.partialorder %v241, 20.0
        %vm1394 = vcmp.gt.f32.partialorder %v242, 20.0
        %vm1395 = vcmp.gt.f32.partialorder %v243, 20.0
        %vm1396 = vcmp.gt.f32.partialorder %v244, 20.0
        %vm1397 = vcmp.gt.f32.partialorder %v245, 20.0
        %vm1398 = vcmp.gt.f32.partialorder %v246, 20.0
        %vm1399 = vcmp.gt.f32.partialorder %v247, 20.0
        %vm1400 = vcmp.gt.f32.partialorder %v248, 20.0
        %vm1401 = vcmp.gt.f32.partialorder %v249, 20.0
        %vm1402 = vcmp.gt.f32.partialorder %v250, 20.0
        %vm1403 = vcmp.gt.f32.partialorder %v251, 20.0
        %vm1404 = vcmp.gt.f32.partialorder %v252, 20.0
        %vm1405 = vcmp.gt.f32.partialorder %v253, 20.0
        %vm1406 = vcmp.gt.f32.partialorder %v254, 20.0
        %vm1407 = vcmp.gt.f32.partialorder %v255, 20.0
        %vm1408 = vcmp.gt.f32.partialorder %v256, 20.0
        %vm1409 = vcmp.gt.f32.partialorder %v257, 20.0
        %vm1410 = vcmp.gt.f32.partialorder %v258, 20.0
        %vm1411 = vcmp.gt.f32.partialorder %v259, 20.0
        %vm1412 = vcmp.gt.f32.partialorder %v260, 20.0
        %vm1413 = vcmp.gt.f32.partialorder %v261, 20.0
        %vm1414 = vcmp.gt.f32.partialorder %v262, 20.0
        %vm1415 = vcmp.gt.f32.partialorder %v263, 20.0
        %vm1416 = vcmp.gt.f32.partialorder %v264, 20.0
        %v1417 = vmul.f32 %v137, %v1034
        %v1418 = vmul.f32 %v138, %v1036
        %v1419 = vmul.f32 %v139, %v1038
        %v1420 = vmul.f32 %v140, %v1040
        %v1421 = vmul.f32 %v141, %v1042
        %v1422 = vmul.f32 %v142, %v1044
        %v1423 = vmul.f32 %v143, %v1046
        %v1424 = vmul.f32 %v144, %v1048
        %v1425 = vmul.f32 %v145, %v1050
        %v1426 = vmul.f32 %v146, %v1052
        %v1427 = vmul.f32 %v147, %v1054
        %v1428 = vmul.f32 %v148, %v1056
        %v1429 = vmul.f32 %v149, %v1058
        %v1430 = vmul.f32 %v150, %v1060
        %v1431 = vmul.f32 %v151, %v1062
        %v1432 = vmul.f32 %v152, %v1064
        %v1433 = vmul.f32 %v153, %v1066
        %v1434 = vmul.f32 %v154, %v1068
        %v1435 = vmul.f32 %v155, %v1070
        %v1436 = vmul.f32 %v156, %v1072
        %v1437 = vmul.f32 %v157, %v1074
        %v1438 = vmul.f32 %v158, %v1076
        %v1439 = vmul.f32 %v159, %v1078
        %v1440 = vmul.f32 %v160, %v1080
        %v1441 = vmul.f32 %v161, %v1082
        %v1442 = vmul.f32 %v162, %v1084
        %v1443 = vmul.f32 %v163, %v1086
        %v1444 = vmul.f32 %v164, %v1088
        %v1445 = vmul.f32 %v165, %v1090
        %v1446 = vmul.f32 %v166, %v1092
        %v1447 = vmul.f32 %v167, %v1094
        %v1448 = vmul.f32 %v168, %v1096
        %v1449 = vmul.f32 %v169, %v1098
        %v1450 = vmul.f32 %v170, %v1100
        %v1451 = vmul.f32 %v171, %v1102
        %v1452 = vmul.f32 %v172, %v1104
        %v1453 = vmul.f32 %v173, %v1106
        %v1454 = vmul.f32 %v174, %v1108
        %v1455 = vmul.f32 %v175, %v1110
        %v1456 = vmul.f32 %v176, %v1112
        %v1457 = vmul.f32 %v177, %v1114
        %v1458 = vmul.f32 %v178, %v1116
        %v1459 = vmul.f32 %v179, %v1118
        %v1460 = vmul.f32 %v180, %v1120
        %v1461 = vmul.f32 %v181, %v1122
        %v1462 = vmul.f32 %v182, %v1124
        %v1463 = vmul.f32 %v183, %v1126
        %v1464 = vmul.f32 %v184, %v1128
        %v1465 = vmul.f32 %v185, %v1130
        %v1466 = vmul.f32 %v186, %v1132
        %v1467 = vmul.f32 %v187, %v1134
        %v1468 = vmul.f32 %v188, %v1136
        %v1469 = vmul.f32 %v189, %v1138
        %v1470 = vmul.f32 %v190, %v1140
        %v1471 = vmul.f32 %v191, %v1142
        %v1472 = vmul.f32 %v192, %v1144
        %v1473 = vmul.f32 %v193, %v1146
        %v1474 = vmul.f32 %v194, %v1148
        %v1475 = vmul.f32 %v195, %v1150
        %v1476 = vmul.f32 %v196, %v1152
        %v1477 = vmul.f32 %v197, %v1154
        %v1478 = vmul.f32 %v198, %v1156
        %v1479 = vmul.f32 %v199, %v1158
        %v1480 = vmul.f32 %v200, %v1160
        %v1481 = vmul.f32 %v201, %v1162
        %v1482 = vmul.f32 %v202, %v1164
        %v1483 = vmul.f32 %v203, %v1166
        %v1484 = vmul.f32 %v204, %v1168
        %v1485 = vmul.f32 %v205, %v1170
        %v1486 = vmul.f32 %v206, %v1172
        %v1487 = vmul.f32 %v207, %v1174
        %v1488 = vmul.f32 %v208, %v1176
        %v1489 = vmul.f32 %v209, %v1178
        %v1490 = vmul.f32 %v210, %v1180
        %v1491 = vmul.f32 %v211, %v1182
        %v1492 = vmul.f32 %v212, %v1184
        %v1493 = vmul.f32 %v213, %v1186
        %v1494 = vmul.f32 %v214, %v1188
        %v1495 = vmul.f32 %v215, %v1190
        %v1496 = vmul.f32 %v216, %v1192
        %v1497 = vmul.f32 %v217, %v1194
        %v1498 = vmul.f32 %v218, %v1196
        %v1499 = vmul.f32 %v219, %v1198
        %v1500 = vmul.f32 %v220, %v1200
        %v1501 = vmul.f32 %v221, %v1202
        %v1502 = vmul.f32 %v222, %v1204
        %v1503 = vmul.f32 %v223, %v1206
        %v1504 = vmul.f32 %v224, %v1208
        %v1505 = vmul.f32 %v225, %v1210
        %v1506 = vmul.f32 %v226, %v1212
        %v1507 = vmul.f32 %v227, %v1214
        %v1508 = vmul.f32 %v228, %v1216
        %v1509 = vmul.f32 %v229, %v1218
        %v1510 = vmul.f32 %v230, %v1220
        %v1511 = vmul.f32 %v231, %v1222
        %v1512 = vmul.f32 %v232, %v1224
        %v1513 = vmul.f32 %v233, %v1226
        %v1514 = vmul.f32 %v234, %v1228
        %v1515 = vmul.f32 %v235, %v1230
        %v1516 = vmul.f32 %v236, %v1232
        %v1517 = vmul.f32 %v237, %v1234
        %v1518 = vmul.f32 %v238, %v1236
        %v1519 = vmul.f32 %v239, %v1238
        %v1520 = vmul.f32 %v240, %v1240
        %v1521 = vmul.f32 %v241, %v1242
        %v1522 = vmul.f32 %v242, %v1244
        %v1523 = vmul.f32 %v243, %v1246
        %v1524 = vmul.f32 %v244, %v1248
        %v1525 = vmul.f32 %v245, %v1250
        %v1526 = vmul.f32 %v246, %v1252
        %v1527 = vmul.f32 %v247, %v1254
        %v1528 = vmul.f32 %v248, %v1256
        %v1529 = vmul.f32 %v249, %v1258
        %v1530 = vmul.f32 %v250, %v1260
        %v1531 = vmul.f32 %v251, %v1262
        %v1532 = vmul.f32 %v252, %v1264
        %v1533 = vmul.f32 %v253, %v1266
        %v1534 = vmul.f32 %v254, %v1268
        %v1535 = vmul.f32 %v255, %v1270
        %v1536 = vmul.f32 %v256, %v1272
        %v1537 = vmul.f32 %v257, %v1274
        %v1538 = vmul.f32 %v258, %v1276
        %v1539 = vmul.f32 %v259, %v1278
        %v1540 = vmul.f32 %v260, %v1280
        %v1541 = vmul.f32 %v261, %v1282
        %v1542 = vmul.f32 %v262, %v1284
        %v1543 = vmul.f32 %v263, %v1286
        %v1544 = vmul.f32 %v264, %v1288
        %v1545 = vsel %vm1289, %v137, %v1417
        %v1546 = vsel %vm1290, %v138, %v1418
        %v1547 = vsel %vm1291, %v139, %v1419
        %v1548 = vsel %vm1292, %v140, %v1420
        %v1549 = vsel %vm1293, %v141, %v1421
        %v1550 = vsel %vm1294, %v142, %v1422
        %v1551 = vsel %vm1295, %v143, %v1423
        %v1552 = vsel %vm1296, %v144, %v1424
        %v1553 = vsel %vm1297, %v145, %v1425
        %v1554 = vsel %vm1298, %v146, %v1426
        %v1555 = vsel %vm1299, %v147, %v1427
        %v1556 = vsel %vm1300, %v148, %v1428
        %v1557 = vsel %vm1301, %v149, %v1429
        %v1558 = vsel %vm1302, %v150, %v1430
        %v1559 = vsel %vm1303, %v151, %v1431
        %v1560 = vsel %vm1304, %v152, %v1432
        %v1561 = vsel %vm1305, %v153, %v1433
        %v1562 = vsel %vm1306, %v154, %v1434
        %v1563 = vsel %vm1307, %v155, %v1435
        %v1564 = vsel %vm1308, %v156, %v1436
        %v1565 = vsel %vm1309, %v157, %v1437
        %v1566 = vsel %vm1310, %v158, %v1438
        %v1567 = vsel %vm1311, %v159, %v1439
        %v1568 = vsel %vm1312, %v160, %v1440
        %v1569 = vsel %vm1313, %v161, %v1441
        %v1570 = vsel %vm1314, %v162, %v1442
        %v1571 = vsel %vm1315, %v163, %v1443
        %v1572 = vsel %vm1316, %v164, %v1444
        %v1573 = vsel %vm1317, %v165, %v1445
        %v1574 = vsel %vm1318, %v166, %v1446
        %v1575 = vsel %vm1319, %v167, %v1447
        %v1576 = vsel %vm1320, %v168, %v1448
        %v1577 = vsel %vm1321, %v169, %v1449
        %v1578 = vsel %vm1322, %v170, %v1450
        %v1579 = vsel %vm1323, %v171, %v1451
        %v1580 = vsel %vm1324, %v172, %v1452
        %v1581 = vsel %vm1325, %v173, %v1453
        %v1582 = vsel %vm1326, %v174, %v1454
        %v1583 = vsel %vm1327, %v175, %v1455
        %v1584 = vsel %vm1328, %v176, %v1456
        %v1585 = vsel %vm1329, %v177, %v1457
        %v1586 = vsel %vm1330, %v178, %v1458
        %v1587 = vsel %vm1331, %v179, %v1459
        %v1588 = vsel %vm1332, %v180, %v1460
        %v1589 = vsel %vm1333, %v181, %v1461
        %v1590 = vsel %vm1334, %v182, %v1462
        %v1591 = vsel %vm1335, %v183, %v1463
        %v1592 = vsel %vm1336, %v184, %v1464
        %v1593 = vsel %vm1337, %v185, %v1465
        %v1594 = vsel %vm1338, %v186, %v1466
        %v1595 = vsel %vm1339, %v187, %v1467
        %v1596 = vsel %vm1340, %v188, %v1468
        %v1597 = vsel %vm1341, %v189, %v1469
        %v1598 = vsel %vm1342, %v190, %v1470
        %v1599 = vsel %vm1343, %v191, %v1471
        %v1600 = vsel %vm1344, %v192, %v1472
        %v1601 = vsel %vm1345, %v193, %v1473
        %v1602 = vsel %vm1346, %v194, %v1474
        %v1603 = vsel %vm1347, %v195, %v1475
        %v1604 = vsel %vm1348, %v196, %v1476
        %v1605 = vsel %vm1349, %v197, %v1477
        %v1606 = vsel %vm1350, %v198, %v1478
        %v1607 = vsel %vm1351, %v199, %v1479
        %v1608 = vsel %vm1352, %v200, %v1480
        %v1609 = vsel %vm1353, %v201, %v1481
        %v1610 = vsel %vm1354, %v202, %v1482
        %v1611 = vsel %vm1355, %v203, %v1483
        %v1612 = vsel %vm1356, %v204, %v1484
        %v1613 = vsel %vm1357, %v205, %v1485
        %v1614 = vsel %vm1358, %v206, %v1486
        %v1615 = vsel %vm1359, %v207, %v1487
        %v1616 = vsel %vm1360, %v208, %v1488
        %v1617 = vsel %vm1361, %v209, %v1489
        %v1618 = vsel %vm1362, %v210, %v1490
        %v1619 = vsel %vm1363, %v211, %v1491
        %v1620 = vsel %vm1364, %v212, %v1492
        %v1621 = vsel %vm1365, %v213, %v1493
        %v1622 = vsel %vm1366, %v214, %v1494
        %v1623 = vsel %vm1367, %v215, %v1495
        %v1624 = vsel %vm1368, %v216, %v1496
        %v1625 = vsel %vm1369, %v217, %v1497
        %v1626 = vsel %vm1370, %v218, %v1498
        %v1627 = vsel %vm1371, %v219, %v1499
        %v1628 = vsel %vm1372, %v220, %v1500
        %v1629 = vsel %vm1373, %v221, %v1501
        %v1630 = vsel %vm1374, %v222, %v1502
        %v1631 = vsel %vm1375, %v223, %v1503
        %v1632 = vsel %vm1376, %v224, %v1504
        %v1633 = vsel %vm1377, %v225, %v1505
        %v1634 = vsel %vm1378, %v226, %v1506
        %v1635 = vsel %vm1379, %v227, %v1507
        %v1636 = vsel %vm1380, %v228, %v1508
        %v1637 = vsel %vm1381, %v229, %v1509
        %v1638 = vsel %vm1382, %v230, %v1510
        %v1639 = vsel %vm1383, %v231, %v1511
        %v1640 = vsel %vm1384, %v232, %v1512
        %v1641 = vsel %vm1385, %v233, %v1513
        %v1642 = vsel %vm1386, %v234, %v1514
        %v1643 = vsel %vm1387, %v235, %v1515
        %v1644 = vsel %vm1388, %v236, %v1516
        %v1645 = vsel %vm1389, %v237, %v1517
        %v1646 = vsel %vm1390, %v238, %v1518
        %v1647 = vsel %vm1391, %v239, %v1519
        %v1648 = vsel %vm1392, %v240, %v1520
        %v1649 = vsel %vm1393, %v241, %v1521
        %v1650 = vsel %vm1394, %v242, %v1522
        %v1651 = vsel %vm1395, %v243, %v1523
        %v1652 = vsel %vm1396, %v244, %v1524
        %v1653 = vsel %vm1397, %v245, %v1525
        %v1654 = vsel %vm1398, %v246, %v1526
        %v1655 = vsel %vm1399, %v247, %v1527
        %v1656 = vsel %vm1400, %v248, %v1528
        %v1657 = vsel %vm1401, %v249, %v1529
        %v1658 = vsel %vm1402, %v250, %v1530
        %v1659 = vsel %vm1403, %v251, %v1531
        %v1660 = vsel %vm1404, %v252, %v1532
        %v1661 = vsel %vm1405, %v253, %v1533
        %v1662 = vsel %vm1406, %v254, %v1534
        %v1663 = vsel %vm1407, %v255, %v1535
        %v1664 = vsel %vm1408, %v256, %v1536
        %v1665 = vsel %vm1409, %v257, %v1537
        %v1666 = vsel %vm1410, %v258, %v1538
        %v1667 = vsel %vm1411, %v259, %v1539
        %v1668 = vsel %vm1412, %v260, %v1540
        %v1669 = vsel %vm1413, %v261, %v1541
        %v1670 = vsel %vm1414, %v262, %v1542
        %v1671 = vsel %vm1415, %v263, %v1543
        %v1672 = vsel %vm1416, %v264, %v1544
        %1673 = vst [vmem:[%s134] sm:$0xff] %v1545
        %1674 = vst [vmem:[%s134 + $0x8] sm:$0xff] %v1546
        %1675 = vst [vmem:[%s134 + $0x10] sm:$0xff] %v1547
        %1676 = vst [vmem:[%s134 + $0x18] sm:$0xff] %v1548
        %1677 = vst [vmem:[%s134 + $0x20] sm:$0xff] %v1549
        %1678 = vst [vmem:[%s134 + $0x28] sm:$0xff] %v1550
        %1679 = vst [vmem:[%s134 + $0x30] sm:$0xff] %v1551
        %1680 = vst [vmem:[%s134 + $0x38] sm:$0xff] %v1552
        %1681 = vst [vmem:[%s134 + $0x40] sm:$0xff] %v1553
        %1682 = vst [vmem:[%s134 + $0x48] sm:$0xff] %v1554
        %1683 = vst [vmem:[%s134 + $0x50] sm:$0xff] %v1555
        %1684 = vst [vmem:[%s134 + $0x58] sm:$0xff] %v1556
        %1685 = vst [vmem:[%s134 + $0x60] sm:$0xff] %v1557
        %1686 = vst [vmem:[%s134 + $0x68] sm:$0xff] %v1558
        %1687 = vst [vmem:[%s134 + $0x70] sm:$0xff] %v1559
        %1688 = vst [vmem:[%s134 + $0x78] sm:$0xff] %v1560
        %1689 = vst [vmem:[%s134 + $0x80] sm:$0xff] %v1561
        %1690 = vst [vmem:[%s134 + $0x88] sm:$0xff] %v1562
        %1691 = vst [vmem:[%s134 + $0x90] sm:$0xff] %v1563
        %1692 = vst [vmem:[%s134 + $0x98] sm:$0xff] %v1564
        %1693 = vst [vmem:[%s134 + $0xa0] sm:$0xff] %v1565
        %1694 = vst [vmem:[%s134 + $0xa8] sm:$0xff] %v1566
        %1695 = vst [vmem:[%s134 + $0xb0] sm:$0xff] %v1567
        %1696 = vst [vmem:[%s134 + $0xb8] sm:$0xff] %v1568
        %1697 = vst [vmem:[%s134 + $0xc0] sm:$0xff] %v1569
        %1698 = vst [vmem:[%s134 + $0xc8] sm:$0xff] %v1570
        %1699 = vst [vmem:[%s134 + $0xd0] sm:$0xff] %v1571
        %1700 = vst [vmem:[%s134 + $0xd8] sm:$0xff] %v1572
        %1701 = vst [vmem:[%s134 + $0xe0] sm:$0xff] %v1573
        %1702 = vst [vmem:[%s134 + $0xe8] sm:$0xff] %v1574
        %1703 = vst [vmem:[%s134 + $0xf0] sm:$0xff] %v1575
        %1704 = vst [vmem:[%s134 + $0xf8] sm:$0xff] %v1576
        %1705 = vst [vmem:[%s134 + $0x100] sm:$0xff] %v1577
        %1706 = vst [vmem:[%s134 + $0x108] sm:$0xff] %v1578
        %1707 = vst [vmem:[%s134 + $0x110] sm:$0xff] %v1579
        %1708 = vst [vmem:[%s134 + $0x118] sm:$0xff] %v1580
        %1709 = vst [vmem:[%s134 + $0x120] sm:$0xff] %v1581
        %1710 = vst [vmem:[%s134 + $0x128] sm:$0xff] %v1582
        %1711 = vst [vmem:[%s134 + $0x130] sm:$0xff] %v1583
        %1712 = vst [vmem:[%s134 + $0x138] sm:$0xff] %v1584
        %1713 = vst [vmem:[%s134 + $0x140] sm:$0xff] %v1585
        %1714 = vst [vmem:[%s134 + $0x148] sm:$0xff] %v1586
        %1715 = vst [vmem:[%s134 + $0x150] sm:$0xff] %v1587
        %1716 = vst [vmem:[%s134 + $0x158] sm:$0xff] %v1588
        %1717 = vst [vmem:[%s134 + $0x160] sm:$0xff] %v1589
        %1718 = vst [vmem:[%s134 + $0x168] sm:$0xff] %v1590
        %1719 = vst [vmem:[%s134 + $0x170] sm:$0xff] %v1591
        %1720 = vst [vmem:[%s134 + $0x178] sm:$0xff] %v1592
        %1721 = vst [vmem:[%s134 + $0x180] sm:$0xff] %v1593
        %1722 = vst [vmem:[%s134 + $0x188] sm:$0xff] %v1594
        %1723 = vst [vmem:[%s134 + $0x190] sm:$0xff] %v1595
        %1724 = vst [vmem:[%s134 + $0x198] sm:$0xff] %v1596
        %1725 = vst [vmem:[%s134 + $0x1a0] sm:$0xff] %v1597
        %1726 = vst [vmem:[%s134 + $0x1a8] sm:$0xff] %v1598
        %1727 = vst [vmem:[%s134 + $0x1b0] sm:$0xff] %v1599
        %1728 = vst [vmem:[%s134 + $0x1b8] sm:$0xff] %v1600
        %1729 = vst [vmem:[%s134 + $0x1c0] sm:$0xff] %v1601
        %1730 = vst [vmem:[%s134 + $0x1c8] sm:$0xff] %v1602
        %1731 = vst [vmem:[%s134 + $0x1d0] sm:$0xff] %v1603
        %1732 = vst [vmem:[%s134 + $0x1d8] sm:$0xff] %v1604
        %1733 = vst [vmem:[%s134 + $0x1e0] sm:$0xff] %v1605
        %1734 = vst [vmem:[%s134 + $0x1e8] sm:$0xff] %v1606
        %1735 = vst [vmem:[%s134 + $0x1f0] sm:$0xff] %v1607
        %1736 = vst [vmem:[%s134 + $0x1f8] sm:$0xff] %v1608
        %1737 = vst [vmem:[%s134 + $0x200] sm:$0xff] %v1609
        %1738 = vst [vmem:[%s134 + $0x208] sm:$0xff] %v1610
        %1739 = vst [vmem:[%s134 + $0x210] sm:$0xff] %v1611
        %1740 = vst [vmem:[%s134 + $0x218] sm:$0xff] %v1612
        %1741 = vst [vmem:[%s134 + $0x220] sm:$0xff] %v1613
        %1742 = vst [vmem:[%s134 + $0x228] sm:$0xff] %v1614
        %1743 = vst [vmem:[%s134 + $0x230] sm:$0xff] %v1615
        %1744 = vst [vmem:[%s134 + $0x238] sm:$0xff] %v1616
        %1745 = vst [vmem:[%s134 + $0x240] sm:$0xff] %v1617
        %1746 = vst [vmem:[%s134 + $0x248] sm:$0xff] %v1618
        %1747 = vst [vmem:[%s134 + $0x250] sm:$0xff] %v1619
        %1748 = vst [vmem:[%s134 + $0x258] sm:$0xff] %v1620
        %1749 = vst [vmem:[%s134 + $0x260] sm:$0xff] %v1621
        %1750 = vst [vmem:[%s134 + $0x268] sm:$0xff] %v1622
        %1751 = vst [vmem:[%s134 + $0x270] sm:$0xff] %v1623
        %1752 = vst [vmem:[%s134 + $0x278] sm:$0xff] %v1624
        %1753 = vst [vmem:[%s134 + $0x280] sm:$0xff] %v1625
        %1754 = vst [vmem:[%s134 + $0x288] sm:$0xff] %v1626
        %1755 = vst [vmem:[%s134 + $0x290] sm:$0xff] %v1627
        %1756 = vst [vmem:[%s134 + $0x298] sm:$0xff] %v1628
        %1757 = vst [vmem:[%s134 + $0x2a0] sm:$0xff] %v1629
        %1758 = vst [vmem:[%s134 + $0x2a8] sm:$0xff] %v1630
        %1759 = vst [vmem:[%s134 + $0x2b0] sm:$0xff] %v1631
        %1760 = vst [vmem:[%s134 + $0x2b8] sm:$0xff] %v1632
        %1761 = vst [vmem:[%s134 + $0x2c0] sm:$0xff] %v1633
        %1762 = vst [vmem:[%s134 + $0x2c8] sm:$0xff] %v1634
        %1763 = vst [vmem:[%s134 + $0x2d0] sm:$0xff] %v1635
        %1764 = vst [vmem:[%s134 + $0x2d8] sm:$0xff] %v1636
        %1765 = vst [vmem:[%s134 + $0x2e0] sm:$0xff] %v1637
        %1766 = vst [vmem:[%s134 + $0x2e8] sm:$0xff] %v1638
        %1767 = vst [vmem:[%s134 + $0x2f0] sm:$0xff] %v1639
        %1768 = vst [vmem:[%s134 + $0x2f8] sm:$0xff] %v1640
        %1769 = vst [vmem:[%s134 + $0x300] sm:$0xff] %v1641
        %1770 = vst [vmem:[%s134 + $0x308] sm:$0xff] %v1642
        %1771 = vst [vmem:[%s134 + $0x310] sm:$0xff] %v1643
        %1772 = vst [vmem:[%s134 + $0x318] sm:$0xff] %v1644
        %1773 = vst [vmem:[%s134 + $0x320] sm:$0xff] %v1645
        %1774 = vst [vmem:[%s134 + $0x328] sm:$0xff] %v1646
        %1775 = vst [vmem:[%s134 + $0x330] sm:$0xff] %v1647
        %1776 = vst [vmem:[%s134 + $0x338] sm:$0xff] %v1648
        %1777 = vst [vmem:[%s134 + $0x340] sm:$0xff] %v1649
        %1778 = vst [vmem:[%s134 + $0x348] sm:$0xff] %v1650
        %1779 = vst [vmem:[%s134 + $0x350] sm:$0xff] %v1651
        %1780 = vst [vmem:[%s134 + $0x358] sm:$0xff] %v1652
        %1781 = vst [vmem:[%s134 + $0x360] sm:$0xff] %v1653
        %1782 = vst [vmem:[%s134 + $0x368] sm:$0xff] %v1654
        %1783 = vst [vmem:[%s134 + $0x370] sm:$0xff] %v1655
        %1784 = vst [vmem:[%s134 + $0x378] sm:$0xff] %v1656
        %1785 = vst [vmem:[%s134 + $0x380] sm:$0xff] %v1657
        %1786 = vst [vmem:[%s134 + $0x388] sm:$0xff] %v1658
        %1787 = vst [vmem:[%s134 + $0x390] sm:$0xff] %v1659
        %1788 = vst [vmem:[%s134 + $0x398] sm:$0xff] %v1660
        %1789 = vst [vmem:[%s134 + $0x3a0] sm:$0xff] %v1661
        %1790 = vst [vmem:[%s134 + $0x3a8] sm:$0xff] %v1662
        %1791 = vst [vmem:[%s134 + $0x3b0] sm:$0xff] %v1663
        %1792 = vst [vmem:[%s134 + $0x3b8] sm:$0xff] %v1664
        %1793 = vst [vmem:[%s134 + $0x3c0] sm:$0xff] %v1665
        %1794 = vst [vmem:[%s134 + $0x3c8] sm:$0xff] %v1666
        %1795 = vst [vmem:[%s134 + $0x3d0] sm:$0xff] %v1667
        %1796 = vst [vmem:[%s134 + $0x3d8] sm:$0xff] %v1668
        %1797 = vst [vmem:[%s134 + $0x3e0] sm:$0xff] %v1669
        %1798 = vst [vmem:[%s134 + $0x3e8] sm:$0xff] %v1670
        %1799 = vst [vmem:[%s134 + $0x3f0] sm:$0xff] %v1671
        %1800 = vst [vmem:[%s134 + $0x3f8] sm:$0xff] %v1672
        %s1801 = sand.u32 %s52, 1
        %s1802 = scalar_lea.sflag [#allocation4], %s1801
        %s1803 = sand.u32 %s52, 1
        %s1804 = smul.addr %s1803, 1024
        %s1805 = scalar_lea.vmem [#allocation5], %s1804
        // Predicated region
        $region29: #{tpu_custom_call.1} parent=23 // pred_check
          %p1806 = pneg %p62
        $region30: #{tpu_custom_call.1} parent=23 // pred_check_branch
          %1808 = sbr.rel (%p1806) target = $region32
        $region31: #{tpu_custom_call.1} parent=23 // pred_region
          %s1809 = smul.u32 128, %s18
          %s1811 = ssub.s32 16384, 16384
          %1812 = vsyncadd %s1802, %s1811
          %s1813 = smul.addr %s1809, 128
          %s1814 = scalar_lea.hbm %s1, %s1813
          %s1815 = sshll.u32 %s1805, 4
          %s1816 = int_to_ptr.vmem [resolvable:$true] %s1815
          %1821 = dma.vmem_to_hbm [thread:$0]  %s1816, 16384, %s1814, %s1802, 128, 128, 8
        $region32: #{tpu_custom_call.1} parent=23 // pred_fallthru
          _
      $region24: #{tpu_custom_call.1} parent=5 // pred_fallthru
        _
      %p1822 = scmp.le.s32.totalorder 2, %s13
      // Predicated region
      $region33: #{tpu_custom_call.1} parent=5 // pred_check
        %p1823 = pneg %p1822
      $region34: #{tpu_custom_call.1} parent=5 // pred_check_branch
        %1825 = sbr.rel (%p1823) target = $region36
      $region35: #{tpu_custom_call.1} parent=5 // pred_region
        %s1826 = ssub.s32 %s13, 2
        // Predicated region
        $region37: #{tpu_custom_call.1} parent=35 // pred_check
          %p1827 = pneg %p68
        $region38: #{tpu_custom_call.1} parent=35 // pred_check_branch
          %1829 = sbr.rel (%p1827) target = $region40
        $region39: #{tpu_custom_call.1} parent=35 // pred_region
          %s1830 = sand.u32 %s53, 1
          %s1831 = scalar_lea.sflag [#allocation4], %s1830
          %s1832 = sand.u32 %s53, 1
          %s1833 = smul.addr %s1832, 1024
          %s1834 = scalar_lea.vmem [#allocation5], %s1833
          %1835 = dma.done %s1831, 16384
        $region40: #{tpu_custom_call.1} parent=35 // pred_fallthru
          _
      $region36: #{tpu_custom_call.1} parent=5 // pred_fallthru
        _
    $region6: #{tpu_custom_call.1} parent=1 // loop_footer
      %s17 = sadd.s32 1, %s13
    $region7: #{tpu_custom_call.1} parent=1 // loop_footer_branch
      %12 = sbr.rel target = $region3
    $region8: #{tpu_custom_call.1} parent=1 // loop_exit
      _
    %1836 = vsyncpa [#allocation3], 1
    %s1837 = scalar_lea.sflag [#allocation3], 1
    %1838 = vsyncpa %s1837, 1
    %1839 = vsyncpa [#allocation4], 1
    %s1840 = scalar_lea.sflag [#allocation4], 1
    %1841 = vsyncpa %s1840, 1

</llo_original>
